<compile_context>
chip_gen: v7x
topology: tpu7x:2x2x1
jax: 0.10.0
libtpu: 0.0.40
codegen_flags: <defaults>
</compile_context>

<pallas_src>
import jax
import jax.numpy as jnp
from jax import lax
from jax.experimental import pallas as pl
from jax.experimental.pallas import tpu as pltpu


def _round_up(x, m):
    return ((x + m - 1) // m) * m


def _pad2d(x, rows, cols):
    pr = rows - x.shape[0]
    pc = cols - x.shape[1]
    if pr == 0 and pc == 0:
        return x
    return jnp.pad(x, ((0, pr), (0, pc)))


def _choose_tiles(n):
    """Return (Np, tm, tk) with tm | Np, tk | Np and Np // tm >= 2.

    >= 2 row blocks keeps both v7x TensorCores busy even on small graphs;
    larger graphs use big tiles (fewer grid steps, bigger DMAs, fewer emb
    re-reads per row tile).
    """
    if n <= 1024:
        np_ = _round_up(max(n, 256), 256)
        return np_, np_ // 2, np_
    if n <= 8192:
        np_ = _round_up(n, 1024)
        return np_, 512, 1024
    np_ = _round_up(n, 2048)
    return np_, 1024, 2048


def gcmc_layer_kernel(adj_ref, emb_ref, w_ref, accin_ref,
                      newemb_ref, accout_ref, msum_ref):
    """One propagation layer: new = normalize(relu((adj @ emb) @ W)).

    Grid: (row tiles i [parallel], K tiles k [arbitrary]).
    adj/emb/W stream in bf16; msum_ref accumulates adj @ emb in f32 over k.
    The epilogue (filter matmul, ReLU, L2 normalize, running-sum update) runs
    once per row tile at k == last.
    """
    k = pl.program_id(1)

    @pl.when(k == 0)
    def _():
        msum_ref[...] = jnp.zeros_like(msum_ref)

    # embeddings = sparse.mm(adj, embeddings) -> dense tiled bf16 matmul on the
    # MXU with f32 accumulation.
    msum_ref[...] += jnp.dot(
        adj_ref[...], emb_ref[...], preferred_element_type=jnp.float32
    )

    @pl.when(k == pl.num_programs(1) - 1)
    def _():
        # embeddings = relu(embeddings @ filter_i); bf16 x bf16 -> f32 on MXU.
        h = jnp.maximum(
            jnp.dot(
                msum_ref[...].astype(jnp.bfloat16),
                w_ref[...],
                preferred_element_type=jnp.float32,
            ),
            0.0,
        )
        # TODO(synk): Dropout(0.3) is identity in inference mode; no RNG applied.
        # embeddings = F.normalize(embeddings, p=2, dim=1)
        #   1 / max(sqrt(ss), eps) == rsqrt(max(ss, eps^2)); rsqrt runs on the
        #   EUP. Only differs from the reference for rows whose norm lies in
        #   (1e-24, 1e-12) -- not a practical concern (and zero rows stay zero).
        sumsq = jnp.sum(h * h, axis=1, keepdims=True)
        inv = lax.rsqrt(jnp.maximum(sumsq, jnp.float32(1e-24)))
        h = h * inv
        newemb_ref[...] = h.astype(jnp.bfloat16)
        accout_ref[...] = accin_ref[...] + h


def _make_layer_call(Np, Dp, tm, tk):
    grid = (Np // tm, Np // tk)

    # Explicit VMEM budget from the tile footprint (double-buffered inputs /
    # outputs + the f32 accumulator scratch), with 2x slack, capped at 40 MiB
    # so it is safe on v7x's 64 MiB VMEM (v5e/v6e have 128 MiB).
    bufs = 2
    vmem_est = (
        tm * tk * 2 * bufs        # adj tile (bf16)
        + tk * Dp * 2 * bufs      # emb slab tile (bf16)
        + Dp * Dp * 2 * bufs      # filter (bf16)
        + tm * Dp * 4 * bufs      # running-sum input tile (f32)
        + tm * Dp * 2 * bufs      # new-emb output tile (bf16)
        + tm * Dp * 4 * bufs      # running-sum output tile (f32)
        + tm * Dp * 4             # msum accumulator scratch (f32)
    )
    vmem_limit = min(max(2 * vmem_est, 16 * 1024 * 1024), 40 * 1024 * 1024)

    return pl.pallas_call(
        gcmc_layer_kernel,
        out_shape=(
            jax.ShapeDtypeStruct((Np, Dp), jnp.bfloat16),  # new layer embeddings
            jax.ShapeDtypeStruct((Np, Dp), jnp.float32),   # updated running sum
        ),
        grid_spec=pltpu.PrefetchScalarGridSpec(
            num_scalar_prefetch=0,
            grid=grid,
            in_specs=[
                pl.BlockSpec((tm, tk), lambda i, k: (i, k)),   # adj tile (bf16)
                pl.BlockSpec((tk, Dp), lambda i, k: (k, 0)),   # emb K-slab (bf16)
                pl.BlockSpec((Dp, Dp), lambda i, k: (0, 0)),   # filter (bf16)
                pl.BlockSpec((tm, Dp), lambda i, k: (i, 0)),   # running sum in (f32)
            ],
            out_specs=[
                pl.BlockSpec((tm, Dp), lambda i, k: (i, 0)),
                pl.BlockSpec((tm, Dp), lambda i, k: (i, 0)),
            ],
            scratch_shapes=[pltpu.VMEM((tm, Dp), jnp.float32)],
        ),
        # acc += h happens in place: input 3 (running-sum in) aliases output 1.
        input_output_aliases={3: 1},
        compiler_params=pltpu.CompilerParams(
            dimension_semantics=("parallel", "arbitrary"),
            vmem_limit_bytes=int(vmem_limit),
        ),
    )


def gcmc_forward(adj, user_emb, item_emb, filters):
    """Returns (users, items) exactly like GCMC.forward (eval mode)."""
    n_users = user_emb.shape[0]
    emb0 = jnp.concatenate([user_emb, item_emb], axis=0).astype(jnp.float32)
    N, D = emb0.shape

    # Pad to lane/tile-friendly shapes (zero padding leaves results unchanged).
    Dp = _round_up(max(D, 128), 128)
    Np, tm, tk = _choose_tiles(N)

    adj_p = _pad2d(adj.astype(jnp.bfloat16), Np, Np)         # streamed in bf16
    emb_p32 = _pad2d(emb0, Np, Dp)                            # f32 running sum
    emb_p = emb_p32.astype(jnp.bfloat16)                      # bf16 matmul operand
    filters_p = [_pad2d(w.astype(jnp.bfloat16), Dp, Dp) for w in filters]

    layer_call = _make_layer_call(Np, Dp, tm, tk)

    # all_emb running sum starts from the layer-0 embeddings (kept in f32).
    emb = emb_p
    acc = emb_p32
    for w_p in filters_p:
        emb, acc = layer_call(adj_p, emb, w_p, acc)

    users = acc[:n_users, :D]
    items = acc[n_users:N, :D]
    return users, items


gcmc_forward_jit = jax.jit(gcmc_forward)


def gcmc_reference(adj, user_emb, item_emb, filters):
    """Pure-JAX f32 reference mirroring the PyTorch forward (eval mode)."""
    emb = jnp.concatenate([user_emb, item_emb], axis=0)
    acc = emb
    for w in filters:
        emb = adj @ emb
        emb = jnp.maximum(emb @ w, 0.0)
        norm = jnp.sqrt(jnp.sum(emb * emb, axis=1, keepdims=True))
        emb = emb / jnp.maximum(norm, 1e-12)
        acc = acc + emb
    return acc[: user_emb.shape[0]], acc[user_emb.shape[0]:]


def xavier_uniform(key, shape):
    fan_in, fan_out = shape[0], shape[1]
    bound = jnp.sqrt(6.0 / (fan_in + fan_out))
    return jax.random.uniform(
        key, shape, dtype=jnp.float32, minval=-bound, maxval=bound
    )


def _run_case(key, n_users, n_items, emb_dim, atol):
    N = n_users + n_items
    k_u, k_i, k_adj = jax.random.split(key, 3)

    # Deterministic parameter init matching __init__:
    #   xavier_uniform_ for both embedding tables, eye_ for the 3 filters.
    user_emb = xavier_uniform(k_u, (n_users, emb_dim))
    item_emb = xavier_uniform(k_i, (n_items, emb_dim))
    filters = [jnp.eye(emb_dim, dtype=jnp.float32) for _ in range(3)]

    # Dense stand-in for the sparse normalized adjacency.
    adj = jax.random.uniform(k_adj, (N, N), dtype=jnp.float32)
    adj = adj / jnp.sum(adj, axis=1, keepdims=True)

    users, items = gcmc_forward_jit(adj, user_emb, item_emb, filters)
    jax.block_until_ready((users, items))

    ref_u, ref_i = gcmc_reference(adj, user_emb, item_emb, filters)
    # bf16 streaming of adj / emb -> loosened tolerance vs. the f32 reference.
    assert jnp.allclose(users, ref_u, atol=atol, rtol=atol), (
        float(jnp.max(jnp.abs(users - ref_u))))
    assert jnp.allclose(items, ref_i, atol=atol, rtol=atol), (
        float(jnp.max(jnp.abs(items - ref_i))))
    assert users.shape == (n_users, emb_dim) and items.shape == (n_items, emb_dim)


if __name__ == "__main__":
    key = jax.random.PRNGKey(0)
    k_small, k_big = jax.random.split(key)

    # Small case (single K tile, two row tiles).
    _run_case(k_small, n_users=8, n_items=8, emb_dim=32, atol=5e-2)

    # Larger case (N > 1024) exercising the tiled K-reduction path:
    # grid k > 1, accumulator reset / finalize across k.
    _run_case(k_big, n_users=640, n_items=640, emb_dim=32, atol=5e-2)

    print("KERNEL_OK")
</pallas_src>

<mosaic_0001>
module attributes {stable_mosaic.version = 11 : i64} {
  func.func @gcmc_layer_kernel(%arg0: i32, %arg1: i32, %arg2: memref<128x256xbf16, #tpu.memory_space<vmem>>, %arg3: memref<256x128xbf16, #tpu.memory_space<vmem>>, %arg4: memref<128x128xbf16, #tpu.memory_space<vmem>>, %arg5: memref<128x128xf32, #tpu.memory_space<vmem>>, %arg6: memref<128x128xbf16, #tpu.memory_space<vmem>>, %arg7: memref<128x128xf32, #tpu.memory_space<vmem>>, %arg8: memref<128x128xf32, #tpu.memory_space<vmem>>) attributes {dimension_semantics = [#tpu.dimension_semantics<parallel>, #tpu.dimension_semantics<arbitrary>], iteration_bounds = array<i64: 2, 1>, scalar_prefetch = 0 : i64, scratch_operands = 1 : i64, tpu.core_type = #tpu.core_type<tc>, window_params = [{transform_indices = @transform_0, window_bounds = array<i64: 128, 256>}, {transform_indices = @transform_1, window_bounds = array<i64: 256, 128>}, {pipeline_mode = #tpu.pipeline_mode<synchronous>, transform_indices = @transform_2, window_bounds = array<i64: 128, 128>}, {transform_indices = @transform_3, window_bounds = array<i64: 128, 128>}, {transform_indices = @transform_4, window_bounds = array<i64: 128, 128>}, {transform_indices = @transform_5, window_bounds = array<i64: 128, 128>}]} {
    %c0_i32 = arith.constant 0 : i32
    %0 = arith.cmpi eq, %arg1, %c0_i32 : i32
    %1 = arith.extui %0 : i1 to i32
    %c0_i32_0 = arith.constant 0 : i32
    %2 = arith.cmpi ne, %1, %c0_i32_0 : i32
    scf.if %2 {
      %cst_10 = arith.constant 0.000000e+00 : f32
      %12 = vector.broadcast %cst_10 : f32 to vector<128x128xf32>
      %c0_11 = arith.constant 0 : index
      %c0_12 = arith.constant 0 : index
      %13 = vector.load %arg8[%c0_11, %c0_12] : memref<128x128xf32, #tpu.memory_space<vmem>>, vector<128x128xf32>
      tpu.vector_store %arg8[%c0_11, %c0_12], %12 {strides = array<i32>} : memref<128x128xf32, #tpu.memory_space<vmem>>, vector<128x128xf32>,
    } else {
    }
    %c0 = arith.constant 0 : index
    %c0_1 = arith.constant 0 : index
    %3 = vector.load %arg8[%c0, %c0_1] : memref<128x128xf32, #tpu.memory_space<vmem>>, vector<128x128xf32>
    %c0_2 = arith.constant 0 : index
    %c0_3 = arith.constant 0 : index
    %4 = vector.load %arg2[%c0_2, %c0_3] : memref<128x256xbf16, #tpu.memory_space<vmem>>, vector<128x256xbf16>
    %c0_4 = arith.constant 0 : index
    %c0_5 = arith.constant 0 : index
    %5 = vector.load %arg3[%c0_4, %c0_5] : memref<256x128xbf16, #tpu.memory_space<vmem>>, vector<256x128xbf16>
    %cst = arith.constant dense<0.000000e+00> : vector<128x128xf32>
    %6 = tpu.matmul %4, %5, %cst {dimension_numbers = #tpu.dot_dimension_numbers<[1], [0], [0], [1], [0, 0, 1, 1], [], []>} : vector<128x256xbf16>, vector<256x128xbf16>, vector<128x128xf32> -> vector<128x128xf32>
    %7 = arith.addf %3, %6 : vector<128x128xf32>
    %c0_6 = arith.constant 0 : index
    %c0_7 = arith.constant 0 : index
    %8 = vector.load %arg8[%c0_6, %c0_7] : memref<128x128xf32, #tpu.memory_space<vmem>>, vector<128x128xf32>
    tpu.vector_store %arg8[%c0_6, %c0_7], %7 {strides = array<i32>} : memref<128x128xf32, #tpu.memory_space<vmem>>, vector<128x128xf32>,
    %c0_i32_8 = arith.constant 0 : i32
    %9 = arith.cmpi eq, %arg1, %c0_i32_8 : i32
    %10 = arith.extui %9 : i1 to i32
    %c0_i32_9 = arith.constant 0 : i32
    %11 = arith.cmpi ne, %10, %c0_i32_9 : i32
    scf.if %11 {
      %c0_10 = arith.constant 0 : index
      %c0_11 = arith.constant 0 : index
      %12 = vector.load %arg8[%c0_10, %c0_11] : memref<128x128xf32, #tpu.memory_space<vmem>>, vector<128x128xf32>
      %13 = arith.truncf %12 : vector<128x128xf32> to vector<128x128xbf16>
      %c0_12 = arith.constant 0 : index
      %c0_13 = arith.constant 0 : index
      %14 = vector.load %arg4[%c0_12, %c0_13] : memref<128x128xbf16, #tpu.memory_space<vmem>>, vector<128x128xbf16>
      %cst_14 = arith.constant dense<0.000000e+00> : vector<128x128xf32>
      %15 = tpu.matmul %13, %14, %cst_14 {dimension_numbers = #tpu.dot_dimension_numbers<[1], [0], [0], [1], [0, 0, 1, 1], [], []>} : vector<128x128xbf16>, vector<128x128xbf16>, vector<128x128xf32> -> vector<128x128xf32>
      %cst_15 = arith.constant 0.000000e+00 : f32
      %16 = vector.broadcast %cst_15 : f32 to vector<128x128xf32>
      %17 = arith.maximumf %15, %16 : vector<128x128xf32>
      %18 = arith.mulf %17, %17 : vector<128x128xf32>
      %cst_16 = arith.constant dense<0.000000e+00> : vector<128xf32>
      %19 = vector.multi_reduction <add>, %18, %cst_16 [1] : vector<128x128xf32> to vector<128xf32>
      %20 = vector.shape_cast %19 : vector<128xf32> to vector<128x1xf32>
      %cst_17 = arith.constant 1.000000e-24 : f32
      %21 = vector.broadcast %cst_17 : f32 to vector<128x1xf32>
      %22 = arith.maximumf %20, %21 : vector<128x1xf32>
      %23 = math.rsqrt %22 : vector<128x1xf32>
      %24 = vector.broadcast %23 : vector<128x1xf32> to vector<128x128xf32>
      %25 = arith.mulf %17, %24 : vector<128x128xf32>
      %26 = arith.truncf %25 : vector<128x128xf32> to vector<128x128xbf16>
      %c0_18 = arith.constant 0 : index
      %c0_19 = arith.constant 0 : index
      %27 = vector.load %arg6[%c0_18, %c0_19] : memref<128x128xbf16, #tpu.memory_space<vmem>>, vector<128x128xbf16>
      tpu.vector_store %arg6[%c0_18, %c0_19], %26 {strides = array<i32>} : memref<128x128xbf16, #tpu.memory_space<vmem>>, vector<128x128xbf16>,
      %c0_20 = arith.constant 0 : index
      %c0_21 = arith.constant 0 : index
      %28 = vector.load %arg5[%c0_20, %c0_21] : memref<128x128xf32, #tpu.memory_space<vmem>>, vector<128x128xf32>
      %29 = arith.addf %28, %25 : vector<128x128xf32>
      %c0_22 = arith.constant 0 : index
      %c0_23 = arith.constant 0 : index
      %30 = vector.load %arg7[%c0_22, %c0_23] : memref<128x128xf32, #tpu.memory_space<vmem>>, vector<128x128xf32>
      tpu.vector_store %arg7[%c0_22, %c0_23], %29 {strides = array<i32>} : memref<128x128xf32, #tpu.memory_space<vmem>>, vector<128x128xf32>,
    } else {
    }
    return
  }
  func.func @transform_0(%arg0: i32, %arg1: i32) -> (i32, i32) {
    %c0_i32 = arith.constant 0 : i32
    return %arg0, %arg1 : i32, i32
  }
  func.func @transform_1(%arg0: i32, %arg1: i32) -> (i32, i32) {
    %c0_i32 = arith.constant 0 : i32
    %c0_i32_0 = arith.constant 0 : i32
    return %arg1, %c0_i32 : i32, i32
  }
  func.func @transform_2(%arg0: i32, %arg1: i32) -> (i32, i32) {
    %c0_i32 = arith.constant 0 : i32
    %c0_i32_0 = arith.constant 0 : i32
    %c0_i32_1 = arith.constant 0 : i32
    return %c0_i32, %c0_i32_0 : i32, i32
  }
  func.func @transform_3(%arg0: i32, %arg1: i32) -> (i32, i32) {
    %c0_i32 = arith.constant 0 : i32
    %c0_i32_0 = arith.constant 0 : i32
    return %arg0, %c0_i32 : i32, i32
  }
  func.func @transform_4(%arg0: i32, %arg1: i32) -> (i32, i32) {
    %c0_i32 = arith.constant 0 : i32
    %c0_i32_0 = arith.constant 0 : i32
    return %arg0, %c0_i32 : i32, i32
  }
  func.func @transform_5(%arg0: i32, %arg1: i32) -> (i32, i32) {
    %c0_i32 = arith.constant 0 : i32
    %c0_i32_0 = arith.constant 0 : i32
    return %arg0, %c0_i32 : i32, i32
  }
}

module attributes {stable_mosaic.version = 11 : i64} {
  func.func @gcmc_layer_kernel(%arg0: i32, %arg1: i32, %arg2: memref<128x256xbf16, #tpu.memory_space<vmem>>, %arg3: memref<256x128xbf16, #tpu.memory_space<vmem>>, %arg4: memref<128x128xbf16, #tpu.memory_space<vmem>>, %arg5: memref<128x128xf32, #tpu.memory_space<vmem>>, %arg6: memref<128x128xbf16, #tpu.memory_space<vmem>>, %arg7: memref<128x128xf32, #tpu.memory_space<vmem>>, %arg8: memref<128x128xf32, #tpu.memory_space<vmem>>) attributes {dimension_semantics = [#tpu.dimension_semantics<parallel>, #tpu.dimension_semantics<arbitrary>], iteration_bounds = array<i64: 2, 1>, scalar_prefetch = 0 : i64, scratch_operands = 1 : i64, tpu.core_type = #tpu.core_type<tc>, window_params = [{transform_indices = @transform_0, window_bounds = array<i64: 128, 256>}, {transform_indices = @transform_1, window_bounds = array<i64: 256, 128>}, {pipeline_mode = #tpu.pipeline_mode<synchronous>, transform_indices = @transform_2, window_bounds = array<i64: 128, 128>}, {transform_indices = @transform_3, window_bounds = array<i64: 128, 128>}, {transform_indices = @transform_4, window_bounds = array<i64: 128, 128>}, {transform_indices = @transform_5, window_bounds = array<i64: 128, 128>}]} {
    %c0_i32 = arith.constant 0 : i32
    %0 = arith.cmpi eq, %arg1, %c0_i32 : i32
    %1 = arith.extui %0 : i1 to i32
    %c0_i32_0 = arith.constant 0 : i32
    %2 = arith.cmpi ne, %1, %c0_i32_0 : i32
    scf.if %2 {
      %cst_10 = arith.constant 0.000000e+00 : f32
      %12 = vector.broadcast %cst_10 : f32 to vector<128x128xf32>
      %c0_11 = arith.constant 0 : index
      %c0_12 = arith.constant 0 : index
      %13 = vector.load %arg8[%c0_11, %c0_12] : memref<128x128xf32, #tpu.memory_space<vmem>>, vector<128x128xf32>
      tpu.vector_store %arg8[%c0_11, %c0_12], %12 {strides = array<i32>} : memref<128x128xf32, #tpu.memory_space<vmem>>, vector<128x128xf32>,
    } else {
    }
    %c0 = arith.constant 0 : index
    %c0_1 = arith.constant 0 : index
    %3 = vector.load %arg8[%c0, %c0_1] : memref<128x128xf32, #tpu.memory_space<vmem>>, vector<128x128xf32>
    %c0_2 = arith.constant 0 : index
    %c0_3 = arith.constant 0 : index
    %4 = vector.load %arg2[%c0_2, %c0_3] : memref<128x256xbf16, #tpu.memory_space<vmem>>, vector<128x256xbf16>
    %c0_4 = arith.constant 0 : index
    %c0_5 = arith.constant 0 : index
    %5 = vector.load %arg3[%c0_4, %c0_5] : memref<256x128xbf16, #tpu.memory_space<vmem>>, vector<256x128xbf16>
    %cst = arith.constant dense<0.000000e+00> : vector<128x128xf32>
    %6 = tpu.matmul %4, %5, %cst {dimension_numbers = #tpu.dot_dimension_numbers<[1], [0], [0], [1], [0, 0, 1, 1], [], []>} : vector<128x256xbf16>, vector<256x128xbf16>, vector<128x128xf32> -> vector<128x128xf32>
    %7 = arith.addf %3, %6 : vector<128x128xf32>
    %c0_6 = arith.constant 0 : index
    %c0_7 = arith.constant 0 : index
    %8 = vector.load %arg8[%c0_6, %c0_7] : memref<128x128xf32, #tpu.memory_space<vmem>>, vector<128x128xf32>
    tpu.vector_store %arg8[%c0_6, %c0_7], %7 {strides = array<i32>} : memref<128x128xf32, #tpu.memory_space<vmem>>, vector<128x128xf32>,
    %c0_i32_8 = arith.constant 0 : i32
    %9 = arith.cmpi eq, %arg1, %c0_i32_8 : i32
    %10 = arith.extui %9 : i1 to i32
    %c0_i32_9 = arith.constant 0 : i32
    %11 = arith.cmpi ne, %10, %c0_i32_9 : i32
    scf.if %11 {
      %c0_10 = arith.constant 0 : index
      %c0_11 = arith.constant 0 : index
      %12 = vector.load %arg8[%c0_10, %c0_11] : memref<128x128xf32, #tpu.memory_space<vmem>>, vector<128x128xf32>
      %13 = arith.truncf %12 : vector<128x128xf32> to vector<128x128xbf16>
      %c0_12 = arith.constant 0 : index
      %c0_13 = arith.constant 0 : index
      %14 = vector.load %arg4[%c0_12, %c0_13] : memref<128x128xbf16, #tpu.memory_space<vmem>>, vector<128x128xbf16>
      %cst_14 = arith.constant dense<0.000000e+00> : vector<128x128xf32>
      %15 = tpu.matmul %13, %14, %cst_14 {dimension_numbers = #tpu.dot_dimension_numbers<[1], [0], [0], [1], [0, 0, 1, 1], [], []>} : vector<128x128xbf16>, vector<128x128xbf16>, vector<128x128xf32> -> vector<128x128xf32>
      %cst_15 = arith.constant 0.000000e+00 : f32
      %16 = vector.broadcast %cst_15 : f32 to vector<128x128xf32>
      %17 = arith.maximumf %15, %16 : vector<128x128xf32>
      %18 = arith.mulf %17, %17 : vector<128x128xf32>
      %cst_16 = arith.constant dense<0.000000e+00> : vector<128xf32>
      %19 = vector.multi_reduction <add>, %18, %cst_16 [1] : vector<128x128xf32> to vector<128xf32>
      %20 = vector.shape_cast %19 : vector<128xf32> to vector<128x1xf32>
      %cst_17 = arith.constant 1.000000e-24 : f32
      %21 = vector.broadcast %cst_17 : f32 to vector<128x1xf32>
      %22 = arith.maximumf %20, %21 : vector<128x1xf32>
      %23 = math.rsqrt %22 : vector<128x1xf32>
      %24 = vector.broadcast %23 : vector<128x1xf32> to vector<128x128xf32>
      %25 = arith.mulf %17, %24 : vector<128x128xf32>
      %26 = arith.truncf %25 : vector<128x128xf32> to vector<128x128xbf16>
      %c0_18 = arith.constant 0 : index
      %c0_19 = arith.constant 0 : index
      %27 = vector.load %arg6[%c0_18, %c0_19] : memref<128x128xbf16, #tpu.memory_space<vmem>>, vector<128x128xbf16>
      tpu.vector_store %arg6[%c0_18, %c0_19], %26 {strides = array<i32>} : memref<128x128xbf16, #tpu.memory_space<vmem>>, vector<128x128xbf16>,
      %c0_20 = arith.constant 0 : index
      %c0_21 = arith.constant 0 : index
      %28 = vector.load %arg5[%c0_20, %c0_21] : memref<128x128xf32, #tpu.memory_space<vmem>>, vector<128x128xf32>
      %29 = arith.addf %28, %25 : vector<128x128xf32>
      %c0_22 = arith.constant 0 : index
      %c0_23 = arith.constant 0 : index
      %30 = vector.load %arg7[%c0_22, %c0_23] : memref<128x128xf32, #tpu.memory_space<vmem>>, vector<128x128xf32>
      tpu.vector_store %arg7[%c0_22, %c0_23], %29 {strides = array<i32>} : memref<128x128xf32, #tpu.memory_space<vmem>>, vector<128x128xf32>,
    } else {
    }
    return
  }
  func.func @transform_0(%arg0: i32, %arg1: i32) -> (i32, i32) {
    %c0_i32 = arith.constant 0 : i32
    return %arg0, %arg1 : i32, i32
  }
  func.func @transform_1(%arg0: i32, %arg1: i32) -> (i32, i32) {
    %c0_i32 = arith.constant 0 : i32
    %c0_i32_0 = arith.constant 0 : i32
    return %arg1, %c0_i32 : i32, i32
  }
  func.func @transform_2(%arg0: i32, %arg1: i32) -> (i32, i32) {
    %c0_i32 = arith.constant 0 : i32
    %c0_i32_0 = arith.constant 0 : i32
    %c0_i32_1 = arith.constant 0 : i32
    return %c0_i32, %c0_i32_0 : i32, i32
  }
  func.func @transform_3(%arg0: i32, %arg1: i32) -> (i32, i32) {
    %c0_i32 = arith.constant 0 : i32
    %c0_i32_0 = arith.constant 0 : i32
    return %arg0, %c0_i32 : i32, i32
  }
  func.func @transform_4(%arg0: i32, %arg1: i32) -> (i32, i32) {
    %c0_i32 = arith.constant 0 : i32
    %c0_i32_0 = arith.constant 0 : i32
    return %arg0, %c0_i32 : i32, i32
  }
  func.func @transform_5(%arg0: i32, %arg1: i32) -> (i32, i32) {
    %c0_i32 = arith.constant 0 : i32
    %c0_i32_0 = arith.constant 0 : i32
    return %arg0, %c0_i32 : i32, i32
  }
}

</mosaic_0001>

<llo_original>
// kernel: gcmc_forward.5
$region0: #{gcmc_forward.5}
  #allocation0 [shape = 'u32[]', space=smem, size = 0x4, offset = 0x4, fixed_abs, tag = 'smem constant byte address 0x4 - core index']
  #allocation1 [shape = 'u32[144,128]{1,0:T(1,128)}', space=vmem, size = 0x12000, scoped, tag = 'internal scratch']
  #allocation2 [shape = 'f32[128,128]{1,0:T(8,128)}', space=vmem, size = 0x10000, scoped, tag = 'scratch operand']
  %s0 = inlined_call_operand.vmem [shape: bf16[256,256], index: 0, kind: input, shape index: {}]
  %s1 = inlined_call_operand.vmem [shape: bf16[256,128], index: 1, kind: input, shape index: {}]
  %s2 = inlined_call_operand.vmem [shape: bf16[128,128], index: 2, kind: input, shape index: {}]
  %s3 = inlined_call_operand.vmem [shape: f32[256,128], index: 3, kind: input, shape index: {}, may-alias: {3,5}]
  %s4 = inlined_call_operand.hbm [shape: bf16[256,128], index: 4, kind: output, shape index: {0}]
  %s5 = inlined_call_operand.vmem [shape: f32[256,128], index: 5, kind: output, shape index: {1}, may-alias: {3,5}]
  %6 = xla_tuple %s4, %s5
  %s7 = sld [smem:[#allocation0]]
  $region65: #{gcmc_forward.5} parent=0
    _
  %s9 = ssub.s32 1, %s7
  %s10 = scalar_select 0, %s9, %s7
  $region1: #{gcmc_forward.5} parent=0
    #allocation3 [shape = 'u8[65536]{0}', space=vmem, size = 0x10000, scoped, tag = 'output window, operand 0']
    #allocation4 [shape = 's32[2]{0}', space=sflag, size = 0x8, scoped, tag = 'scoped memory for gcmc_forward.5']
    %11 = vsyncpa [#allocation4], 0
    %s12 = scalar_lea.sflag [#allocation4], 1
    %13 = vsyncpa %s12, 0
    loop: start=0, step=1, limit=4
    $region2: #{gcmc_forward.5} parent=1 // loop_pre_header
      _
    $region3: #{gcmc_forward.5} parent=1 // loop_header
      %s15 = sphi 0, %s19
      %p16 = scmp.ge.s32.totalorder %s15, 4
      %s22 = sphi 0, %s34
      %s23 = sphi 0, %s30
      %s24 = sphi 0, %s22
      %s25 = sphi 0, %s23
      %s26 = sphi 0, %s24
      %s27 = sphi 0, %s25
      %s39 = sphi 0, %s41
      %s42 = sphi 0, %s39
      %s43 = sphi 0, %s42
      %s59 = sphi 0, %s43
      %s65 = sphi 0, %s67
      %s68 = sphi 0, %s65
      %s69 = sphi 0, %s68
      %s85 = sphi 0, %s69
      %s89 = sphi 0, %s89
      %s91 = sphi 0, %s89
      %s92 = sphi 0, %s91
      %s106 = sphi 0, %s92
      %s112 = sphi 0, %s114
      %s115 = sphi 0, %s112
      %s116 = sphi 0, %s115
      %s132 = sphi 0, %s116
      %s138 = sphi 0, %s140
      %s141 = sphi 0, %s138
      %s142 = sphi 0, %s141
      %s158 = sphi 0, %s142
      %s164 = sphi 0, %s166
      %s167 = sphi 0, %s164
      %s168 = sphi 0, %s167
      %s184 = sphi 0, %s168
    $region4: #{gcmc_forward.5} parent=1 // loop_header_branch
      %18 = sbr.rel (%p16) target = $region8
    $region5: #{gcmc_forward.5} parent=1 // loop_body
      %s20 = ssub.s32 %s15, 1
      %s21 = ssub.s32 %s15, 2
      %s28 = sadd.s32 1, %s23
      %p29 = scmp.ge.s32.totalorder %s28, 1
      %s30 = scalar_select %p29, 0, %s28
      %s31 = sadd.s32 1, %s22
      %s32 = scalar_select %p29, %s31, %s22
      %p33 = scmp.ge.s32.totalorder %s32, 2
      %s34 = scalar_select %p33, 0, %s32
      %s35 = ssub.s32 %s22, %s34
      %s36 = ssub.s32 %s23, %s30
      %s37 = sor.u32 %s35, %s36
      %p38 = scmp.eq.s32.totalorder %s37, 0
      %s40 = sadd.s32 %s39, 1
      %s41 = scalar_select %p38, %s39, %s40
      %p44 = pneg %p38
      %p45 = scmp.eq.s32.totalorder %s15, 1
      %p46 = por %p44, %p45
      %p47 = scmp.ne.s32.totalorder %s39, %s42
      %p48 = scmp.eq.s32.totalorder %s15, 0
      %p49 = por %p47, %p48
      %p50 = scmp.ne.s32.totalorder %s39, %s42
      %p51 = scmp.eq.s32.totalorder %s20, 1
      %p52 = por %p50, %p51
      %p53 = scmp.ne.s32.totalorder %s42, %s43
      %p54 = scmp.eq.s32.totalorder %s20, 0
      %p55 = por %p53, %p54
      %p56 = scmp.ne.s32.totalorder %s42, %s43
      %p57 = scmp.eq.s32.totalorder %s21, 1
      %p58 = por %p56, %p57
      %p60 = scmp.ne.s32.totalorder %s43, %s59
      %p61 = scmp.eq.s32.totalorder %s21, 0
      %p62 = por %p60, %p61
      %s63 = ssub.s32 %s23, %s30
      %p64 = scmp.eq.s32.totalorder %s63, 0
      %s66 = sadd.s32 %s65, 1
      %s67 = scalar_select %p64, %s65, %s66
      %p70 = pneg %p64
      %p71 = scmp.eq.s32.totalorder %s15, 1
      %p72 = por %p70, %p71
      %p73 = scmp.ne.s32.totalorder %s65, %s68
      %p74 = scmp.eq.s32.totalorder %s15, 0
      %p75 = por %p73, %p74
      %p76 = scmp.ne.s32.totalorder %s65, %s68
      %p77 = scmp.eq.s32.totalorder %s20, 1
      %p78 = por %p76, %p77
      %p79 = scmp.ne.s32.totalorder %s68, %s69
      %p80 = scmp.eq.s32.totalorder %s20, 0
      %p81 = por %p79, %p80
      %p82 = scmp.ne.s32.totalorder %s68, %s69
      %p83 = scmp.eq.s32.totalorder %s21, 1
      %p84 = por %p82, %p83
      %p86 = scmp.ne.s32.totalorder %s69, %s85
      %p87 = scmp.eq.s32.totalorder %s21, 0
      %p88 = por %p86, %p87
      %s90 = sadd.s32 %s89, 1
      %p93 = scmp.eq.s32.totalorder %s15, 1
      %p94 = scmp.ne.s32.totalorder %s89, %s91
      %p95 = scmp.eq.s32.totalorder %s15, 0
      %p96 = por %p94, %p95
      %p97 = scmp.ne.s32.totalorder %s89, %s91
      %p98 = scmp.eq.s32.totalorder %s20, 1
      %p99 = por %p97, %p98
      %p100 = scmp.ne.s32.totalorder %s91, %s92
      %p101 = scmp.eq.s32.totalorder %s20, 0
      %p102 = por %p100, %p101
      %p103 = scmp.ne.s32.totalorder %s91, %s92
      %p104 = scmp.eq.s32.totalorder %s21, 1
      %p105 = por %p103, %p104
      %p107 = scmp.ne.s32.totalorder %s92, %s106
      %p108 = scmp.eq.s32.totalorder %s21, 0
      %p109 = por %p107, %p108
      %s110 = ssub.s32 %s22, %s34
      %p111 = scmp.eq.s32.totalorder %s110, 0
      %s113 = sadd.s32 %s112, 1
      %s114 = scalar_select %p111, %s112, %s113
      %p117 = pneg %p111
      %p118 = scmp.eq.s32.totalorder %s15, 1
      %p119 = por %p117, %p118
      %p120 = scmp.ne.s32.totalorder %s112, %s115
      %p121 = scmp.eq.s32.totalorder %s15, 0
      %p122 = por %p120, %p121
      %p123 = scmp.ne.s32.totalorder %s112, %s115
      %p124 = scmp.eq.s32.totalorder %s20, 1
      %p125 = por %p123, %p124
      %p126 = scmp.ne.s32.totalorder %s115, %s116
      %p127 = scmp.eq.s32.totalorder %s20, 0
      %p128 = por %p126, %p127
      %p129 = scmp.ne.s32.totalorder %s115, %s116
      %p130 = scmp.eq.s32.totalorder %s21, 1
      %p131 = por %p129, %p130
      %p133 = scmp.ne.s32.totalorder %s116, %s132
      %p134 = scmp.eq.s32.totalorder %s21, 0
      %p135 = por %p133, %p134
      %s136 = ssub.s32 %s22, %s34
      %p137 = scmp.eq.s32.totalorder %s136, 0
      %s139 = sadd.s32 %s138, 1
      %s140 = scalar_select %p137, %s138, %s139
      %p143 = pneg %p137
      %p144 = scmp.eq.s32.totalorder %s15, 1
      %p145 = por %p143, %p144
      %p146 = scmp.ne.s32.totalorder %s138, %s141
      %p147 = scmp.eq.s32.totalorder %s15, 0
      %p148 = por %p146, %p147
      %p149 = scmp.ne.s32.totalorder %s138, %s141
      %p150 = scmp.eq.s32.totalorder %s20, 1
      %p151 = por %p149, %p150
      %p152 = scmp.ne.s32.totalorder %s141, %s142
      %p153 = scmp.eq.s32.totalorder %s20, 0
      %p154 = por %p152, %p153
      %p155 = scmp.ne.s32.totalorder %s141, %s142
      %p156 = scmp.eq.s32.totalorder %s21, 1
      %p157 = por %p155, %p156
      %p159 = scmp.ne.s32.totalorder %s142, %s158
      %p160 = scmp.eq.s32.totalorder %s21, 0
      %p161 = por %p159, %p160
      %s162 = ssub.s32 %s22, %s34
      %p163 = scmp.eq.s32.totalorder %s162, 0
      %s165 = sadd.s32 %s164, 1
      %s166 = scalar_select %p163, %s164, %s165
      %p169 = pneg %p163
      %p170 = scmp.eq.s32.totalorder %s15, 1
      %p171 = por %p169, %p170
      %p172 = scmp.ne.s32.totalorder %s164, %s167
      %p173 = scmp.eq.s32.totalorder %s15, 0
      %p174 = por %p172, %p173
      %p175 = scmp.ne.s32.totalorder %s164, %s167
      %p176 = scmp.eq.s32.totalorder %s20, 1
      %p177 = por %p175, %p176
      %p178 = scmp.ne.s32.totalorder %s167, %s168
      %p179 = scmp.eq.s32.totalorder %s20, 0
      %p180 = por %p178, %p179
      %p181 = scmp.ne.s32.totalorder %s167, %s168
      %p182 = scmp.eq.s32.totalorder %s21, 1
      %p183 = por %p181, %p182
      %p185 = scmp.ne.s32.totalorder %s168, %s184
      %p186 = scmp.eq.s32.totalorder %s21, 0
      %p187 = por %p185, %p186
      %p188 = scmp.le.s32.totalorder 1, %s15
      %p189 = scmp.lt.s32.totalorder %s15, 3
      %p190 = pnand %p188, %p189
      %p191 = pneg %p190
      // Predicated region
      $region9: #{gcmc_forward.5} parent=5 // pred_check
        _
      $region10: #{gcmc_forward.5} parent=5 // pred_check_branch
        %193 = sbr.rel (%p190) target = $region12
      $region11: #{gcmc_forward.5} parent=5 // pred_region
        %s194 = ssub.s32 %s15, 1
        // Predicated region
        $region13: #{gcmc_forward.5} parent=11 // pred_check
          %p195 = pneg %p81
        $region14: #{gcmc_forward.5} parent=11 // pred_check_branch
          %197 = sbr.rel (%p195) target = $region16
        $region15: #{gcmc_forward.5} parent=11 // pred_region
          %s198 = smul.u32 32, %s25
          %p199 = scmp.lt.s32.totalorder %s198, 31
          %s200 = scalar_select %p199, %s198, 31
          %s201 = smul.addr %s200, 4
          %s202 = scalar_lea.vmem %s1, %s201
          %s203 = smul.u32 32, %s25
        $region16: #{gcmc_forward.5} parent=11 // pred_fallthru
          _
        // Predicated region
        $region17: #{gcmc_forward.5} parent=11 // pred_check
          %p204 = pneg %p102
        $region18: #{gcmc_forward.5} parent=11 // pred_check_branch
          %206 = sbr.rel (%p204) target = $region20
        $region19: #{gcmc_forward.5} parent=11 // pred_region
          _
        $region20: #{gcmc_forward.5} parent=11 // pred_fallthru
          _
      $region12: #{gcmc_forward.5} parent=5 // pred_fallthru
        _
      %p207 = scmp.lt.s32.totalorder %s15, 2
      // Predicated region
      $region21: #{gcmc_forward.5} parent=5 // pred_check
        %p208 = pneg %p207
      $region22: #{gcmc_forward.5} parent=5 // pred_check_branch
        %210 = sbr.rel (%p208) target = $region24
      $region23: #{gcmc_forward.5} parent=5 // pred_region
        // Predicated region
        $region25: #{gcmc_forward.5} parent=23 // pred_check
          %p211 = pneg %p49
        $region26: #{gcmc_forward.5} parent=23 // pred_check_branch
          %213 = sbr.rel (%p211) target = $region28
        $region27: #{gcmc_forward.5} parent=23 // pred_region
          %s214 = smul.u32 16, %s22
          %s215 = smul.u32 2, %s23
          %p216 = scmp.lt.s32.totalorder %s214, 31
          %s217 = scalar_select %p216, %s214, 31
          %p218 = scmp.lt.s32.totalorder %s215, 1
          %s219 = scalar_select %p218, %s215, 1
          %s220 = smul.addr %s217, 2
          %s221 = sadd.s32 %s219, %s220
          %s222 = smul.addr %s221, 4
          %s223 = scalar_lea.vmem %s0, %s222
          %s224 = smul.u32 16, %s22
          %s225 = smul.u32 2, %s23
        $region28: #{gcmc_forward.5} parent=23 // pred_fallthru
          _
        // Predicated region
        $region29: #{gcmc_forward.5} parent=23 // pred_check
          %p226 = pneg %p122
        $region30: #{gcmc_forward.5} parent=23 // pred_check_branch
          %228 = sbr.rel (%p226) target = $region32
        $region31: #{gcmc_forward.5} parent=23 // pred_region
          %s229 = smul.u32 16, %s22
          %p230 = scmp.lt.s32.totalorder %s229, 31
          %s231 = scalar_select %p230, %s229, 31
          %s232 = smul.addr %s231, 8
          %s233 = scalar_lea.vmem %s3, %s232
          %s234 = smul.u32 16, %s22
        $region32: #{gcmc_forward.5} parent=23 // pred_fallthru
          _
      $region24: #{gcmc_forward.5} parent=5 // pred_fallthru
        _
      %p235 = scmp.le.s32.totalorder 1, %s15
      %p236 = scmp.lt.s32.totalorder %s15, 3
      %p237 = pnand %p235, %p236
      %p238 = pneg %p237
      // Predicated region
      $region33: #{gcmc_forward.5} parent=5 // pred_check
        _
      $region34: #{gcmc_forward.5} parent=5 // pred_check_branch
        %240 = sbr.rel (%p237) target = $region36
      $region35: #{gcmc_forward.5} parent=5 // pred_region
        %s241 = ssub.s32 %s15, 1
        %s242 = smul.u32 16, %s24
        %s243 = smul.u32 2, %s25
        %p244 = scmp.lt.s32.totalorder %s242, 31
        %s245 = scalar_select %p244, %s242, 31
        %p246 = scmp.lt.s32.totalorder %s243, 1
        %s247 = scalar_select %p246, %s243, 1
        %s248 = smul.addr %s245, 2
        %s249 = sadd.s32 %s247, %s248
        %s250 = smul.addr %s249, 4
        %s251 = scalar_lea.vmem %s0, %s250
        %p252 = pneg %p55
        %p253 = pneg %p52
        %s254 = smul.u32 32, %s25
        %p255 = scmp.lt.s32.totalorder %s254, 31
        %s256 = scalar_select %p255, %s254, 31
        %s257 = smul.addr %s256, 4
        %s258 = scalar_lea.vmem %s1, %s257
        %p259 = pneg %p81
        %p260 = pneg %p78
        %p261 = pneg %p102
        %p262 = pneg %p99
        %s263 = smul.u32 16, %s24
        %p264 = scmp.lt.s32.totalorder %s263, 31
        %s265 = scalar_select %p264, %s263, 31
        %s266 = smul.addr %s265, 8
        %s267 = scalar_lea.vmem %s3, %s266
        %p268 = pneg %p128
        %p269 = pneg %p125
        %p270 = pneg %p154
        %p271 = pneg %p151
        %s272 = sand.u32 %s141, 1
        %s273 = scalar_lea.sflag [#allocation4], %s272
        %s274 = sand.u32 %s141, 1
        %s275 = smul.addr %s274, 64
        %s276 = scalar_lea.vmem [#allocation3], %s275
        %p277 = pneg %p180
        %p278 = pneg %p177
        %s279 = smul.u32 16, %s24
        %p280 = scmp.lt.s32.totalorder %s279, 31
        %s281 = scalar_select %p280, %s279, 31
        %s282 = smul.addr %s281, 8
        %s283 = scalar_lea.vmem %s5, %s282
        %s284 = smul.u32 16, %s24
        %s285 = smul.u32 2, %s25
        %p286 = scmp.lt.s32.totalorder %s284, 31
        %s287 = scalar_select %p286, %s284, 31
        %p288 = scmp.lt.s32.totalorder %s285, 1
        %s289 = scalar_select %p288, %s285, 1
        %s290 = smul.addr %s287, 2
        %s291 = sadd.s32 %s289, %s290
        %s292 = smul.addr %s291, 4
        %s293 = scalar_lea.vmem %s0, %s292
        %s294 = smul.u32 16, %s24
        %s295 = smul.u32 2, %s25
        %s296 = smul.u32 32, %s25
        %p297 = scmp.lt.s32.totalorder %s296, 31
        %s298 = scalar_select %p297, %s296, 31
        %s299 = smul.addr %s298, 4
        %s300 = scalar_lea.vmem %s1, %s299
        %s301 = smul.u32 32, %s25
        %s302 = smul.u32 16, %s24
        %p303 = scmp.lt.s32.totalorder %s302, 31
        %s304 = scalar_select %p303, %s302, 31
        %s305 = smul.addr %s304, 8
        %s306 = scalar_lea.vmem %s3, %s305
        %s307 = smul.u32 16, %s24
        %s308 = smul.u32 16, %s24
        %s309 = smul.u32 16, %s24
        %p310 = scmp.lt.s32.totalorder %s309, 31
        %s311 = scalar_select %p310, %s309, 31
        %s312 = smul.addr %s311, 8
        %s313 = scalar_lea.vmem %s5, %s312
        %s314 = smul.u32 16, %s24
        %p316 = scmp.eq.s32.totalorder %s25, 0
        // Predicated region
        $region37: #{gcmc_forward.5} parent=35 // pred_check
          %p317 = pneg %p316
        $region38: #{gcmc_forward.5} parent=35 // pred_check_branch
          %319 = sbr.rel (%p317) target = $region40
        $region39: #{gcmc_forward.5} parent=35 // pred_region
          %320 = vst [vmem:[#allocation2] sm:$0xff] 0.0
          %321 = vst [vmem:[#allocation2 + $0x8] sm:$0xff] 0.0
          %322 = vst [vmem:[#allocation2 + $0x10] sm:$0xff] 0.0
          %323 = vst [vmem:[#allocation2 + $0x18] sm:$0xff] 0.0
          %324 = vst [vmem:[#allocation2 + $0x20] sm:$0xff] 0.0
          %325 = vst [vmem:[#allocation2 + $0x28] sm:$0xff] 0.0
          %326 = vst [vmem:[#allocation2 + $0x30] sm:$0xff] 0.0
          %327 = vst [vmem:[#allocation2 + $0x38] sm:$0xff] 0.0
          %328 = vst [vmem:[#allocation2 + $0x40] sm:$0xff] 0.0
          %329 = vst [vmem:[#allocation2 + $0x48] sm:$0xff] 0.0
          %330 = vst [vmem:[#allocation2 + $0x50] sm:$0xff] 0.0
          %331 = vst [vmem:[#allocation2 + $0x58] sm:$0xff] 0.0
          %332 = vst [vmem:[#allocation2 + $0x60] sm:$0xff] 0.0
          %333 = vst [vmem:[#allocation2 + $0x68] sm:$0xff] 0.0
          %334 = vst [vmem:[#allocation2 + $0x70] sm:$0xff] 0.0
          %335 = vst [vmem:[#allocation2 + $0x78] sm:$0xff] 0.0
        $region40: #{gcmc_forward.5} parent=35 // pred_fallthru
          _
        %v336 = vld [vmem:[#allocation2] sm:$0xff]
        %v337 = vld [vmem:[#allocation2 + $0x8] sm:$0xff]
        %v338 = vld [vmem:[#allocation2 + $0x10] sm:$0xff]
        %v339 = vld [vmem:[#allocation2 + $0x18] sm:$0xff]
        %v340 = vld [vmem:[#allocation2 + $0x20] sm:$0xff]
        %v341 = vld [vmem:[#allocation2 + $0x28] sm:$0xff]
        %v342 = vld [vmem:[#allocation2 + $0x30] sm:$0xff]
        %v343 = vld [vmem:[#allocation2 + $0x38] sm:$0xff]
        %v344 = vld [vmem:[#allocation2 + $0x40] sm:$0xff]
        %v345 = vld [vmem:[#allocation2 + $0x48] sm:$0xff]
        %v346 = vld [vmem:[#allocation2 + $0x50] sm:$0xff]
        %v347 = vld [vmem:[#allocation2 + $0x58] sm:$0xff]
        %v348 = vld [vmem:[#allocation2 + $0x60] sm:$0xff]
        %v349 = vld [vmem:[#allocation2 + $0x68] sm:$0xff]
        %v350 = vld [vmem:[#allocation2 + $0x70] sm:$0xff]
        %v351 = vld [vmem:[#allocation2 + $0x78] sm:$0xff]
        %v352 = vld [vmem:[%s293] sm:$0xff]
        %v353 = vld [vmem:[%s293 + $0x8] sm:$0xff]
        %v354 = vld [vmem:[%s293 + $0x10] sm:$0xff]
        %v355 = vld [vmem:[%s293 + $0x18] sm:$0xff]
        %v356 = vld [vmem:[%s293 + $0x20] sm:$0xff]
        %v357 = vld [vmem:[%s293 + $0x28] sm:$0xff]
        %v358 = vld [vmem:[%s293 + $0x30] sm:$0xff]
        %v359 = vld [vmem:[%s293 + $0x38] sm:$0xff]
        %v360 = vld [vmem:[%s293 + $0x40] sm:$0xff]
        %v361 = vld [vmem:[%s293 + $0x48] sm:$0xff]
        %v362 = vld [vmem:[%s293 + $0x50] sm:$0xff]
        %v363 = vld [vmem:[%s293 + $0x58] sm:$0xff]
        %v364 = vld [vmem:[%s293 + $0x60] sm:$0xff]
        %v365 = vld [vmem:[%s293 + $0x68] sm:$0xff]
        %v366 = vld [vmem:[%s293 + $0x70] sm:$0xff]
        %v367 = vld [vmem:[%s293 + $0x78] sm:$0xff]
        %v368 = vld [vmem:[%s300] sm:$0xf]
        %v369 = vld [vmem:[%s300 + $0x4] sm:$0xf]
        %v370 = vld [vmem:[%s300 + $0x8] sm:$0xf]
        %v371 = vld [vmem:[%s300 + $0xc] sm:$0xf]
        %v372 = vld [vmem:[%s300 + $0x10] sm:$0xf]
        %v373 = vld [vmem:[%s300 + $0x14] sm:$0xf]
        %v374 = vld [vmem:[%s300 + $0x18] sm:$0xf]
        %v375 = vld [vmem:[%s300 + $0x1c] sm:$0xf]
        %v376 = vld [vmem:[%s300 + $0x20] sm:$0xf]
        %v377 = vld [vmem:[%s300 + $0x24] sm:$0xf]
        %v378 = vld [vmem:[%s300 + $0x28] sm:$0xf]
        %v379 = vld [vmem:[%s300 + $0x2c] sm:$0xf]
        %v380 = vld [vmem:[%s300 + $0x30] sm:$0xf]
        %v381 = vld [vmem:[%s300 + $0x34] sm:$0xf]
        %v382 = vld [vmem:[%s300 + $0x38] sm:$0xf]
        %v383 = vld [vmem:[%s300 + $0x3c] sm:$0xf]
        %v384 = vld [vmem:[%s300 + $0x40] sm:$0xf]
        %v385 = vld [vmem:[%s300 + $0x44] sm:$0xf]
        %v386 = vld [vmem:[%s300 + $0x48] sm:$0xf]
        %v387 = vld [vmem:[%s300 + $0x4c] sm:$0xf]
        %v388 = vld [vmem:[%s300 + $0x50] sm:$0xf]
        %v389 = vld [vmem:[%s300 + $0x54] sm:$0xf]
        %v390 = vld [vmem:[%s300 + $0x58] sm:$0xf]
        %v391 = vld [vmem:[%s300 + $0x5c] sm:$0xf]
        %v392 = vld [vmem:[%s300 + $0x60] sm:$0xf]
        %v393 = vld [vmem:[%s300 + $0x64] sm:$0xf]
        %v394 = vld [vmem:[%s300 + $0x68] sm:$0xf]
        %v395 = vld [vmem:[%s300 + $0x6c] sm:$0xf]
        %v396 = vld [vmem:[%s300 + $0x70] sm:$0xf]
        %v397 = vld [vmem:[%s300 + $0x74] sm:$0xf]
        %v398 = vld [vmem:[%s300 + $0x78] sm:$0xf]
        %v399 = vld [vmem:[%s300 + $0x7c] sm:$0xf]
        %v416 = vunpack.c.l.b16 %v352
        %v417 = vunpack.c.h.b16 %v352
        %v418 = vunpack.c.l.b16 %v353
        %v419 = vunpack.c.h.b16 %v353
        %v420 = vunpack.c.l.b16 %v354
        %v421 = vunpack.c.h.b16 %v354
        %v422 = vunpack.c.l.b16 %v355
        %v423 = vunpack.c.h.b16 %v355
        %v424 = vunpack.c.l.b16 %v356
        %v425 = vunpack.c.h.b16 %v356
        %v426 = vunpack.c.l.b16 %v357
        %v427 = vunpack.c.h.b16 %v357
        %v428 = vunpack.c.l.b16 %v358
        %v429 = vunpack.c.h.b16 %v358
        %v430 = vunpack.c.l.b16 %v359
        %v431 = vunpack.c.h.b16 %v359
        %v432 = vunpack.c.l.b16 %v360
        %v433 = vunpack.c.h.b16 %v360
        %v434 = vunpack.c.l.b16 %v361
        %v435 = vunpack.c.h.b16 %v361
        %v436 = vunpack.c.l.b16 %v362
        %v437 = vunpack.c.h.b16 %v362
        %v438 = vunpack.c.l.b16 %v363
        %v439 = vunpack.c.h.b16 %v363
        %v440 = vunpack.c.l.b16 %v364
        %v441 = vunpack.c.h.b16 %v364
        %v442 = vunpack.c.l.b16 %v365
        %v443 = vunpack.c.h.b16 %v365
        %v444 = vunpack.c.l.b16 %v366
        %v445 = vunpack.c.h.b16 %v366
        %v446 = vunpack.c.l.b16 %v367
        %v447 = vunpack.c.h.b16 %v367
        %v448 = vpack.c.b16 %v418, %v416
        %v449 = vpack.c.b16 %v419, %v417
        %v450 = vpack.c.b16 %v422, %v420
        %v451 = vpack.c.b16 %v423, %v421
        %v452 = vpack.c.b16 %v426, %v424
        %v453 = vpack.c.b16 %v427, %v425
        %v454 = vpack.c.b16 %v430, %v428
        %v455 = vpack.c.b16 %v431, %v429
        %v456 = vpack.c.b16 %v434, %v432
        %v457 = vpack.c.b16 %v435, %v433
        %v458 = vpack.c.b16 %v438, %v436
        %v459 = vpack.c.b16 %v439, %v437
        %v460 = vpack.c.b16 %v442, %v440
        %v461 = vpack.c.b16 %v443, %v441
        %v462 = vpack.c.b16 %v446, %v444
        %v463 = vpack.c.b16 %v447, %v445
        %v512 = vunpack.c.l.b16 %v368
        %v513 = vunpack.c.l.b16 %v369
        %v514 = vunpack.c.l.b16 %v370
        %v515 = vunpack.c.l.b16 %v371
        %v516 = vunpack.c.l.b16 %v372
        %v517 = vunpack.c.l.b16 %v373
        %v518 = vunpack.c.l.b16 %v374
        %v519 = vunpack.c.l.b16 %v375
        %v520 = vunpack.c.l.b16 %v376
        %v521 = vunpack.c.l.b16 %v377
        %v522 = vunpack.c.l.b16 %v378
        %v523 = vunpack.c.l.b16 %v379
        %v524 = vunpack.c.l.b16 %v380
        %v525 = vunpack.c.l.b16 %v381
        %v526 = vunpack.c.l.b16 %v382
        %v527 = vunpack.c.l.b16 %v383
        %v528 = vunpack.c.l.b16 %v384
        %v529 = vunpack.c.l.b16 %v385
        %v530 = vunpack.c.l.b16 %v386
        %v531 = vunpack.c.l.b16 %v387
        %v532 = vunpack.c.l.b16 %v388
        %v533 = vunpack.c.l.b16 %v389
        %v534 = vunpack.c.l.b16 %v390
        %v535 = vunpack.c.l.b16 %v391
        %v536 = vunpack.c.l.b16 %v392
        %v537 = vunpack.c.l.b16 %v393
        %v538 = vunpack.c.l.b16 %v394
        %v539 = vunpack.c.l.b16 %v395
        %v540 = vunpack.c.l.b16 %v396
        %v541 = vunpack.c.l.b16 %v397
        %v542 = vunpack.c.l.b16 %v398
        %v543 = vunpack.c.l.b16 %v399
        %v544 = vpack.c.b16 %v513, %v512
        %v545 = vpack.c.b16 %v515, %v514
        %v546 = vpack.c.b16 %v517, %v516
        %v547 = vpack.c.b16 %v519, %v518
        %v548 = vpack.c.b16 %v521, %v520
        %v549 = vpack.c.b16 %v523, %v522
        %v550 = vpack.c.b16 %v525, %v524
        %v551 = vpack.c.b16 %v527, %v526
        %v552 = vpack.c.b16 %v529, %v528
        %v553 = vpack.c.b16 %v531, %v530
        %v554 = vpack.c.b16 %v533, %v532
        %v555 = vpack.c.b16 %v535, %v534
        %v556 = vpack.c.b16 %v537, %v536
        %v557 = vpack.c.b16 %v539, %v538
        %v558 = vpack.c.b16 %v541, %v540
        %v559 = vpack.c.b16 %v543, %v542
        %576 = vmatprep.subr.bf16.mxu0 0
        %577 = vmatpush1.bf16.msra.mxu0 %v544
        %578 = vmatprep.subr.bf16.mxu0 0
        %579 = vmatpush1.bf16.msra.mxu0 %v545
        %580 = vmatprep.subr.bf16.mxu0 0
        %581 = vmatpush1.bf16.msra.mxu0 %v546
        %582 = vmatprep.subr.bf16.mxu0 0
        %583 = vmatpush1.bf16.msra.mxu0 %v547
        %584 = vmatprep.subr.bf16.mxu0 0
        %585 = vmatpush1.bf16.msra.mxu0 %v548
        %586 = vmatprep.subr.bf16.mxu0 0
        %587 = vmatpush1.bf16.msra.mxu0 %v549
        %588 = vmatprep.subr.bf16.mxu0 0
        %589 = vmatpush1.bf16.msra.mxu0 %v550
        %590 = vmatprep.subr.bf16.mxu0 0
        %591 = vmatpush1.bf16.msra.mxu0 %v551
        %592 = vmatprep.subr.bf16.mxu0 0
        %593 = vmatpush1.bf16.msra.mxu0 %v552
        %594 = vmatprep.subr.bf16.mxu0 0
        %595 = vmatpush1.bf16.msra.mxu0 %v553
        %596 = vmatprep.subr.bf16.mxu0 0
        %597 = vmatpush1.bf16.msra.mxu0 %v554
        %598 = vmatprep.subr.bf16.mxu0 0
        %599 = vmatpush1.bf16.msra.mxu0 %v555
        %600 = vmatprep.subr.bf16.mxu0 0
        %601 = vmatpush1.bf16.msra.mxu0 %v556
        %602 = vmatprep.subr.bf16.mxu0 0
        %603 = vmatpush1.bf16.msra.mxu0 %v557
        %604 = vmatprep.subr.bf16.mxu0 0
        %605 = vmatpush1.bf16.msra.mxu0 %v558
        %606 = vmatprep.subr.bf16.mxu0 0
        %607 = vmatpush1.bf16.msra.mxu0 %v559
        %608 = vmatprep.mubr.bf16.mxu0 %v449
        %609 = vmatmul.mubr.bf16.gmra.mrb[0].mxu0 %v448
        %v610 = vpop.f32.mrb[0].mxu0
        %v611 = vadd.f32 0.0, %v610
        %v612 = vpop.f32.mrb[0].mxu0
        %v613 = vpop.f32.mrb[0].mxu0
        %v614 = vadd.f32 0.0, %v613
        %v615 = vpop.f32.mrb[0].mxu0
        %616 = vmatprep.mubr.bf16.mxu0 %v451
        %617 = vmatmul.mubr.bf16.gmra.mrb[0].mxu0 %v450
        %v618 = vpop.f32.mrb[0].mxu0
        %v619 = vadd.f32 0.0, %v618
        %v620 = vpop.f32.mrb[0].mxu0
        %v621 = vpop.f32.mrb[0].mxu0
        %v622 = vadd.f32 0.0, %v621
        %v623 = vpop.f32.mrb[0].mxu0
        %624 = vmatprep.mubr.bf16.mxu0 %v453
        %625 = vmatmul.mubr.bf16.gmra.mrb[0].mxu0 %v452
        %v626 = vpop.f32.mrb[0].mxu0
        %v627 = vadd.f32 0.0, %v626
        %v628 = vpop.f32.mrb[0].mxu0
        %v629 = vpop.f32.mrb[0].mxu0
        %v630 = vadd.f32 0.0, %v629
        %v631 = vpop.f32.mrb[0].mxu0
        %632 = vmatprep.mubr.bf16.mxu0 %v455
        %633 = vmatmul.mubr.bf16.gmra.mrb[0].mxu0 %v454
        %v634 = vpop.f32.mrb[0].mxu0
        %v635 = vadd.f32 0.0, %v634
        %v636 = vpop.f32.mrb[0].mxu0
        %v637 = vpop.f32.mrb[0].mxu0
        %v638 = vadd.f32 0.0, %v637
        %v639 = vpop.f32.mrb[0].mxu0
        %640 = vmatprep.mubr.bf16.mxu0 %v457
        %641 = vmatmul.mubr.bf16.gmra.mrb[0].mxu0 %v456
        %v642 = vpop.f32.mrb[0].mxu0
        %v643 = vadd.f32 0.0, %v642
        %v644 = vpop.f32.mrb[0].mxu0
        %v645 = vpop.f32.mrb[0].mxu0
        %v646 = vadd.f32 0.0, %v645
        %v647 = vpop.f32.mrb[0].mxu0
        %648 = vmatprep.mubr.bf16.mxu0 %v459
        %649 = vmatmul.mubr.bf16.gmra.mrb[0].mxu0 %v458
        %v650 = vpop.f32.mrb[0].mxu0
        %v651 = vadd.f32 0.0, %v650
        %v652 = vpop.f32.mrb[0].mxu0
        %v653 = vpop.f32.mrb[0].mxu0
        %v654 = vadd.f32 0.0, %v653
        %v655 = vpop.f32.mrb[0].mxu0
        %656 = vmatprep.mubr.bf16.mxu0 %v461
        %657 = vmatmul.mubr.bf16.gmra.mrb[0].mxu0 %v460
        %v658 = vpop.f32.mrb[0].mxu0
        %v659 = vadd.f32 0.0, %v658
        %v660 = vpop.f32.mrb[0].mxu0
        %v661 = vpop.f32.mrb[0].mxu0
        %v662 = vadd.f32 0.0, %v661
        %v663 = vpop.f32.mrb[0].mxu0
        %664 = vmatprep.mubr.bf16.mxu0 %v463
        %665 = vmatmul.mubr.bf16.gmra.mrb[0].mxu0 %v462
        %v666 = vpop.f32.mrb[0].mxu0
        %v667 = vadd.f32 0.0, %v666
        %v668 = vpop.f32.mrb[0].mxu0
        %v669 = vpop.f32.mrb[0].mxu0
        %v670 = vadd.f32 0.0, %v669
        %v671 = vpop.f32.mrb[0].mxu0
        %672 = vdwg.mxu0
        %v673 = vadd.f32 %v336, %v611
        %v674 = vadd.f32 %v337, %v614
        %v675 = vadd.f32 %v338, %v619
        %v676 = vadd.f32 %v339, %v622
        %v677 = vadd.f32 %v340, %v627
        %v678 = vadd.f32 %v341, %v630
        %v679 = vadd.f32 %v342, %v635
        %v680 = vadd.f32 %v343, %v638
        %v681 = vadd.f32 %v344, %v643
        %v682 = vadd.f32 %v345, %v646
        %v683 = vadd.f32 %v346, %v651
        %v684 = vadd.f32 %v347, %v654
        %v685 = vadd.f32 %v348, %v659
        %v686 = vadd.f32 %v349, %v662
        %v687 = vadd.f32 %v350, %v667
        %v688 = vadd.f32 %v351, %v670
        %689 = vst [vmem:[#allocation2] sm:$0xff] %v673
        %690 = vst [vmem:[#allocation2 + $0x8] sm:$0xff] %v674
        %691 = vst [vmem:[#allocation2 + $0x10] sm:$0xff] %v675
        %692 = vst [vmem:[#allocation2 + $0x18] sm:$0xff] %v676
        %693 = vst [vmem:[#allocation2 + $0x20] sm:$0xff] %v677
        %694 = vst [vmem:[#allocation2 + $0x28] sm:$0xff] %v678
        %695 = vst [vmem:[#allocation2 + $0x30] sm:$0xff] %v679
        %696 = vst [vmem:[#allocation2 + $0x38] sm:$0xff] %v680
        %697 = vst [vmem:[#allocation2 + $0x40] sm:$0xff] %v681
        %698 = vst [vmem:[#allocation2 + $0x48] sm:$0xff] %v682
        %699 = vst [vmem:[#allocation2 + $0x50] sm:$0xff] %v683
        %700 = vst [vmem:[#allocation2 + $0x58] sm:$0xff] %v684
        %701 = vst [vmem:[#allocation2 + $0x60] sm:$0xff] %v685
        %702 = vst [vmem:[#allocation2 + $0x68] sm:$0xff] %v686
        %703 = vst [vmem:[#allocation2 + $0x70] sm:$0xff] %v687
        %704 = vst [vmem:[#allocation2 + $0x78] sm:$0xff] %v688
        // Predicated region
        $region41: #{gcmc_forward.5} parent=35 // pred_check
          %p705 = pneg %p316
        $region42: #{gcmc_forward.5} parent=35 // pred_check_branch
          %707 = sbr.rel (%p705) target = $region44
        $region43: #{gcmc_forward.5} parent=35 // pred_region
          %v708 = vld [vmem:[#allocation2] sm:$0xff]
          %v709 = vld [vmem:[#allocation2 + $0x8] sm:$0xff]
          %v710 = vld [vmem:[#allocation2 + $0x10] sm:$0xff]
          %v711 = vld [vmem:[#allocation2 + $0x18] sm:$0xff]
          %v712 = vld [vmem:[#allocation2 + $0x20] sm:$0xff]
          %v713 = vld [vmem:[#allocation2 + $0x28] sm:$0xff]
          %v714 = vld [vmem:[#allocation2 + $0x30] sm:$0xff]
          %v715 = vld [vmem:[#allocation2 + $0x38] sm:$0xff]
          %v716 = vld [vmem:[#allocation2 + $0x40] sm:$0xff]
          %v717 = vld [vmem:[#allocation2 + $0x48] sm:$0xff]
          %v718 = vld [vmem:[#allocation2 + $0x50] sm:$0xff]
          %v719 = vld [vmem:[#allocation2 + $0x58] sm:$0xff]
          %v720 = vld [vmem:[#allocation2 + $0x60] sm:$0xff]
          %v721 = vld [vmem:[#allocation2 + $0x68] sm:$0xff]
          %v722 = vld [vmem:[#allocation2 + $0x70] sm:$0xff]
          %v723 = vld [vmem:[#allocation2 + $0x78] sm:$0xff]
          %v724 = vpack.c.bf16 %v709, %v708
          %v725 = vpack.c.bf16 %v711, %v710
          %v726 = vpack.c.bf16 %v713, %v712
          %v727 = vpack.c.bf16 %v715, %v714
          %v728 = vpack.c.bf16 %v717, %v716
          %v729 = vpack.c.bf16 %v719, %v718
          %v730 = vpack.c.bf16 %v721, %v720
          %v731 = vpack.c.bf16 %v723, %v722
          %v732 = vld [vmem:[%s2] sm:$0xf]
          %v733 = vld [vmem:[%s2 + $0x4] sm:$0xf]
          %v734 = vld [vmem:[%s2 + $0x8] sm:$0xf]
          %v735 = vld [vmem:[%s2 + $0xc] sm:$0xf]
          %v736 = vld [vmem:[%s2 + $0x10] sm:$0xf]
          %v737 = vld [vmem:[%s2 + $0x14] sm:$0xf]
          %v738 = vld [vmem:[%s2 + $0x18] sm:$0xf]
          %v739 = vld [vmem:[%s2 + $0x1c] sm:$0xf]
          %v740 = vld [vmem:[%s2 + $0x20] sm:$0xf]
          %v741 = vld [vmem:[%s2 + $0x24] sm:$0xf]
          %v742 = vld [vmem:[%s2 + $0x28] sm:$0xf]
          %v743 = vld [vmem:[%s2 + $0x2c] sm:$0xf]
          %v744 = vld [vmem:[%s2 + $0x30] sm:$0xf]
          %v745 = vld [vmem:[%s2 + $0x34] sm:$0xf]
          %v746 = vld [vmem:[%s2 + $0x38] sm:$0xf]
          %v747 = vld [vmem:[%s2 + $0x3c] sm:$0xf]
          %v764 = vunpack.c.l.b16 %v732
          %v765 = vunpack.c.l.b16 %v733
          %v766 = vunpack.c.l.b16 %v734
          %v767 = vunpack.c.l.b16 %v735
          %v768 = vunpack.c.l.b16 %v736
          %v769 = vunpack.c.l.b16 %v737
          %v770 = vunpack.c.l.b16 %v738
          %v771 = vunpack.c.l.b16 %v739
          %v772 = vunpack.c.l.b16 %v740
          %v773 = vunpack.c.l.b16 %v741
          %v774 = vunpack.c.l.b16 %v742
          %v775 = vunpack.c.l.b16 %v743
          %v776 = vunpack.c.l.b16 %v744
          %v777 = vunpack.c.l.b16 %v745
          %v778 = vunpack.c.l.b16 %v746
          %v779 = vunpack.c.l.b16 %v747
          %v780 = vpack.c.b16 %v765, %v764
          %v781 = vpack.c.b16 %v767, %v766
          %v782 = vpack.c.b16 %v769, %v768
          %v783 = vpack.c.b16 %v771, %v770
          %v784 = vpack.c.b16 %v773, %v772
          %v785 = vpack.c.b16 %v775, %v774
          %v786 = vpack.c.b16 %v777, %v776
          %v787 = vpack.c.b16 %v779, %v778
          %796 = vmatprep.subr.bf16.mxu0 0
          %797 = vmatpush1.bf16.msra.mxu0 %v780
          %798 = vmatprep.subr.bf16.mxu0 0
          %799 = vmatpush1.bf16.msra.mxu0 %v781
          %800 = vmatprep.subr.bf16.mxu0 0
          %801 = vmatpush1.bf16.msra.mxu0 %v782
          %802 = vmatprep.subr.bf16.mxu0 0
          %803 = vmatpush1.bf16.msra.mxu0 %v783
          %804 = vmatprep.subr.bf16.mxu0 0
          %805 = vmatpush1.bf16.msra.mxu0 %v784
          %806 = vmatprep.subr.bf16.mxu0 0
          %807 = vmatpush1.bf16.msra.mxu0 %v785
          %808 = vmatprep.subr.bf16.mxu0 0
          %809 = vmatpush1.bf16.msra.mxu0 %v786
          %810 = vmatprep.subr.bf16.mxu0 0
          %811 = vmatpush1.bf16.msra.mxu0 %v787
          %812 = vmatprep.subr.bf16.mxu0 0
          %813 = vmatpush1.bf16.msra.mxu0 0
          %814 = vmatprep.subr.bf16.mxu0 0
          %815 = vmatpush1.bf16.msra.mxu0 0
          %816 = vmatprep.subr.bf16.mxu0 0
          %817 = vmatpush1.bf16.msra.mxu0 0
          %818 = vmatprep.subr.bf16.mxu0 0
          %819 = vmatpush1.bf16.msra.mxu0 0
          %820 = vmatprep.subr.bf16.mxu0 0
          %821 = vmatpush1.bf16.msra.mxu0 0
          %822 = vmatprep.subr.bf16.mxu0 0
          %823 = vmatpush1.bf16.msra.mxu0 0
          %824 = vmatprep.subr.bf16.mxu0 0
          %825 = vmatpush1.bf16.msra.mxu0 0
          %826 = vmatprep.subr.bf16.mxu0 0
          %827 = vmatpush1.bf16.msra.mxu0 0
          %828 = vmatprep.mubr.bf16.mxu0 0
          %829 = vmatmul.mubr.bf16.gmra.mrb[0].mxu0 %v724
          %v830 = vpop.f32.mrb[0].mxu0
          %v831 = vadd.f32 0.0, %v830
          %v832 = vpop.f32.mrb[0].mxu0
          %v833 = vpop.f32.mrb[0].mxu0
          %v834 = vadd.f32 0.0, %v833
          %v835 = vpop.f32.mrb[0].mxu0
          %836 = vmatprep.mubr.bf16.mxu0 0
          %837 = vmatmul.mubr.bf16.gmra.mrb[0].mxu0 %v725
          %v838 = vpop.f32.mrb[0].mxu0
          %v839 = vadd.f32 0.0, %v838
          %v840 = vpop.f32.mrb[0].mxu0
          %v841 = vpop.f32.mrb[0].mxu0
          %v842 = vadd.f32 0.0, %v841
          %v843 = vpop.f32.mrb[0].mxu0
          %844 = vmatprep.mubr.bf16.mxu0 0
          %845 = vmatmul.mubr.bf16.gmra.mrb[0].mxu0 %v726
          %v846 = vpop.f32.mrb[0].mxu0
          %v847 = vadd.f32 0.0, %v846
          %v848 = vpop.f32.mrb[0].mxu0
          %v849 = vpop.f32.mrb[0].mxu0
          %v850 = vadd.f32 0.0, %v849
          %v851 = vpop.f32.mrb[0].mxu0
          %852 = vmatprep.mubr.bf16.mxu0 0
          %853 = vmatmul.mubr.bf16.gmra.mrb[0].mxu0 %v727
          %v854 = vpop.f32.mrb[0].mxu0
          %v855 = vadd.f32 0.0, %v854
          %v856 = vpop.f32.mrb[0].mxu0
          %v857 = vpop.f32.mrb[0].mxu0
          %v858 = vadd.f32 0.0, %v857
          %v859 = vpop.f32.mrb[0].mxu0
          %860 = vmatprep.mubr.bf16.mxu0 0
          %861 = vmatmul.mubr.bf16.gmra.mrb[0].mxu0 %v728
          %v862 = vpop.f32.mrb[0].mxu0
          %v863 = vadd.f32 0.0, %v862
          %v864 = vpop.f32.mrb[0].mxu0
          %v865 = vpop.f32.mrb[0].mxu0
          %v866 = vadd.f32 0.0, %v865
          %v867 = vpop.f32.mrb[0].mxu0
          %868 = vmatprep.mubr.bf16.mxu0 0
          %869 = vmatmul.mubr.bf16.gmra.mrb[0].mxu0 %v729
          %v870 = vpop.f32.mrb[0].mxu0
          %v871 = vadd.f32 0.0, %v870
          %v872 = vpop.f32.mrb[0].mxu0
          %v873 = vpop.f32.mrb[0].mxu0
          %v874 = vadd.f32 0.0, %v873
          %v875 = vpop.f32.mrb[0].mxu0
          %876 = vmatprep.mubr.bf16.mxu0 0
          %877 = vmatmul.mubr.bf16.gmra.mrb[0].mxu0 %v730
          %v878 = vpop.f32.mrb[0].mxu0
          %v879 = vadd.f32 0.0, %v878
          %v880 = vpop.f32.mrb[0].mxu0
          %v881 = vpop.f32.mrb[0].mxu0
          %v882 = vadd.f32 0.0, %v881
          %v883 = vpop.f32.mrb[0].mxu0
          %884 = vmatprep.mubr.bf16.mxu0 0
          %885 = vmatmul.mubr.bf16.gmra.mrb[0].mxu0 %v731
          %v886 = vpop.f32.mrb[0].mxu0
          %v887 = vadd.f32 0.0, %v886
          %v888 = vpop.f32.mrb[0].mxu0
          %v889 = vpop.f32.mrb[0].mxu0
          %v890 = vadd.f32 0.0, %v889
          %v891 = vpop.f32.mrb[0].mxu0
          %892 = vdwg.mxu0
          %v893 = vmax.f32 %v831, 0.0
          %v894 = vmax.f32 %v834, 0.0
          %v895 = vmax.f32 %v839, 0.0
          %v896 = vmax.f32 %v842, 0.0
          %v897 = vmax.f32 %v847, 0.0
          %v898 = vmax.f32 %v850, 0.0
          %v899 = vmax.f32 %v855, 0.0
          %v900 = vmax.f32 %v858, 0.0
          %v901 = vmax.f32 %v863, 0.0
          %v902 = vmax.f32 %v866, 0.0
          %v903 = vmax.f32 %v871, 0.0
          %v904 = vmax.f32 %v874, 0.0
          %v905 = vmax.f32 %v879, 0.0
          %v906 = vmax.f32 %v882, 0.0
          %v907 = vmax.f32 %v887, 0.0
          %v908 = vmax.f32 %v890, 0.0
          %v909 = vmul.f32 %v893, %v893
          %v910 = vmul.f32 %v894, %v894
          %v911 = vmul.f32 %v895, %v895
          %v912 = vmul.f32 %v896, %v896
          %v913 = vmul.f32 %v897, %v897
          %v914 = vmul.f32 %v898, %v898
          %v915 = vmul.f32 %v899, %v899
          %v916 = vmul.f32 %v900, %v900
          %v917 = vmul.f32 %v901, %v901
          %v918 = vmul.f32 %v902, %v902
          %v919 = vmul.f32 %v903, %v903
          %v920 = vmul.f32 %v904, %v904
          %v921 = vmul.f32 %v905, %v905
          %v922 = vmul.f32 %v906, %v906
          %v923 = vmul.f32 %v907, %v907
          %v924 = vmul.f32 %v908, %v908
          %925 = vadd.xlane.f32.xlu0 %v909
          %v926 = vpop.xlane.xlu0 %925
          %927 = vadd.xlane.f32.xlu0 %v910
          %v928 = vpop.xlane.xlu0 %927
          %929 = vadd.xlane.f32.xlu0 %v911
          %v930 = vpop.xlane.xlu0 %929
          %931 = vadd.xlane.f32.xlu0 %v912
          %v932 = vpop.xlane.xlu0 %931
          %933 = vadd.xlane.f32.xlu0 %v913
          %v934 = vpop.xlane.xlu0 %933
          %935 = vadd.xlane.f32.xlu0 %v914
          %v936 = vpop.xlane.xlu0 %935
          %937 = vadd.xlane.f32.xlu0 %v915
          %v938 = vpop.xlane.xlu0 %937
          %939 = vadd.xlane.f32.xlu0 %v916
          %v940 = vpop.xlane.xlu0 %939
          %941 = vadd.xlane.f32.xlu0 %v917
          %v942 = vpop.xlane.xlu0 %941
          %943 = vadd.xlane.f32.xlu0 %v918
          %v944 = vpop.xlane.xlu0 %943
          %945 = vadd.xlane.f32.xlu0 %v919
          %v946 = vpop.xlane.xlu0 %945
          %947 = vadd.xlane.f32.xlu0 %v920
          %v948 = vpop.xlane.xlu0 %947
          %949 = vadd.xlane.f32.xlu0 %v921
          %v950 = vpop.xlane.xlu0 %949
          %951 = vadd.xlane.f32.xlu0 %v922
          %v952 = vpop.xlane.xlu0 %951
          %953 = vadd.xlane.f32.xlu0 %v923
          %v954 = vpop.xlane.xlu0 %953
          %955 = vadd.xlane.f32.xlu0 %v924
          %v956 = vpop.xlane.xlu0 %955
          %v957 = vmax.f32 %v926, 1e-24
          %v958 = vmax.f32 %v928, 1e-24
          %v959 = vmax.f32 %v930, 1e-24
          %v960 = vmax.f32 %v932, 1e-24
          %v961 = vmax.f32 %v934, 1e-24
          %v962 = vmax.f32 %v936, 1e-24
          %v963 = vmax.f32 %v938, 1e-24
          %v964 = vmax.f32 %v940, 1e-24
          %v965 = vmax.f32 %v942, 1e-24
          %v966 = vmax.f32 %v944, 1e-24
          %v967 = vmax.f32 %v946, 1e-24
          %v968 = vmax.f32 %v948, 1e-24
          %v969 = vmax.f32 %v950, 1e-24
          %v970 = vmax.f32 %v952, 1e-24
          %v971 = vmax.f32 %v954, 1e-24
          %v972 = vmax.f32 %v956, 1e-24
          %v973 = vrsqrt.pop %v957
          %v974 = vrsqrt.pop %v958
          %v975 = vrsqrt.pop %v959
          %v976 = vrsqrt.pop %v960
          %v977 = vrsqrt.pop %v961
          %v978 = vrsqrt.pop %v962
          %v979 = vrsqrt.pop %v963
          %v980 = vrsqrt.pop %v964
          %v981 = vrsqrt.pop %v965
          %v982 = vrsqrt.pop %v966
          %v983 = vrsqrt.pop %v967
          %v984 = vrsqrt.pop %v968
          %v985 = vrsqrt.pop %v969
          %v986 = vrsqrt.pop %v970
          %v987 = vrsqrt.pop %v971
          %v988 = vrsqrt.pop %v972
          %v989 = vmul.f32 %v893, %v973
          %v990 = vmul.f32 %v894, %v974
          %v991 = vmul.f32 %v895, %v975
          %v992 = vmul.f32 %v896, %v976
          %v993 = vmul.f32 %v897, %v977
          %v994 = vmul.f32 %v898, %v978
          %v995 = vmul.f32 %v899, %v979
          %v996 = vmul.f32 %v900, %v980
          %v997 = vmul.f32 %v901, %v981
          %v998 = vmul.f32 %v902, %v982
          %v999 = vmul.f32 %v903, %v983
          %v1000 = vmul.f32 %v904, %v984
          %v1001 = vmul.f32 %v905, %v985
          %v1002 = vmul.f32 %v906, %v986
          %v1003 = vmul.f32 %v907, %v987
          %v1004 = vmul.f32 %v908, %v988
          %v1005 = vpack.c.bf16 %v990, %v989
          %v1006 = vpack.c.bf16 %v992, %v991
          %v1007 = vpack.c.bf16 %v994, %v993
          %v1008 = vpack.c.bf16 %v996, %v995
          %v1009 = vpack.c.bf16 %v998, %v997
          %v1010 = vpack.c.bf16 %v1000, %v999
          %v1011 = vpack.c.bf16 %v1002, %v1001
          %v1012 = vpack.c.bf16 %v1004, %v1003
          %v1021 = vunpack.c.l.b16 %v1005
          %v1022 = vunpack.c.h.b16 %v1005
          %v1023 = vunpack.c.l.b16 %v1006
          %v1024 = vunpack.c.h.b16 %v1006
          %v1025 = vunpack.c.l.b16 %v1007
          %v1026 = vunpack.c.h.b16 %v1007
          %v1027 = vunpack.c.l.b16 %v1008
          %v1028 = vunpack.c.h.b16 %v1008
          %v1029 = vunpack.c.l.b16 %v1009
          %v1030 = vunpack.c.h.b16 %v1009
          %v1031 = vunpack.c.l.b16 %v1010
          %v1032 = vunpack.c.h.b16 %v1010
          %v1033 = vunpack.c.l.b16 %v1011
          %v1034 = vunpack.c.h.b16 %v1011
          %v1035 = vunpack.c.l.b16 %v1012
          %v1036 = vunpack.c.h.b16 %v1012
          %v1037 = vpack.c.b16 %v1021, %v1021
          %v1038 = vpack.c.b16 %v1022, %v1022
          %v1039 = vpack.c.b16 %v1023, %v1023
          %v1040 = vpack.c.b16 %v1024, %v1024
          %v1041 = vpack.c.b16 %v1025, %v1025
          %v1042 = vpack.c.b16 %v1026, %v1026
          %v1043 = vpack.c.b16 %v1027, %v1027
          %v1044 = vpack.c.b16 %v1028, %v1028
          %v1045 = vpack.c.b16 %v1029, %v1029
          %v1046 = vpack.c.b16 %v1030, %v1030
          %v1047 = vpack.c.b16 %v1031, %v1031
          %v1048 = vpack.c.b16 %v1032, %v1032
          %v1049 = vpack.c.b16 %v1033, %v1033
          %v1050 = vpack.c.b16 %v1034, %v1034
          %v1051 = vpack.c.b16 %v1035, %v1035
          %v1052 = vpack.c.b16 %v1036, %v1036
          %1069 = vst [vmem:[%s276] sm:$0xf] %v1037
          %1070 = vst [vmem:[%s276 + $0x4] sm:$0xf] %v1038
          %1071 = vst [vmem:[%s276 + $0x8] sm:$0xf] %v1039
          %1072 = vst [vmem:[%s276 + $0xc] sm:$0xf] %v1040
          %1073 = vst [vmem:[%s276 + $0x10] sm:$0xf] %v1041
          %1074 = vst [vmem:[%s276 + $0x14] sm:$0xf] %v1042
          %1075 = vst [vmem:[%s276 + $0x18] sm:$0xf] %v1043
          %1076 = vst [vmem:[%s276 + $0x1c] sm:$0xf] %v1044
          %1077 = vst [vmem:[%s276 + $0x20] sm:$0xf] %v1045
          %1078 = vst [vmem:[%s276 + $0x24] sm:$0xf] %v1046
          %1079 = vst [vmem:[%s276 + $0x28] sm:$0xf] %v1047
          %1080 = vst [vmem:[%s276 + $0x2c] sm:$0xf] %v1048
          %1081 = vst [vmem:[%s276 + $0x30] sm:$0xf] %v1049
          %1082 = vst [vmem:[%s276 + $0x34] sm:$0xf] %v1050
          %1083 = vst [vmem:[%s276 + $0x38] sm:$0xf] %v1051
          %1084 = vst [vmem:[%s276 + $0x3c] sm:$0xf] %v1052
          %v1085 = vld [vmem:[%s306] sm:$0xff]
          %v1086 = vld [vmem:[%s306 + $0x8] sm:$0xff]
          %v1087 = vld [vmem:[%s306 + $0x10] sm:$0xff]
          %v1088 = vld [vmem:[%s306 + $0x18] sm:$0xff]
          %v1089 = vld [vmem:[%s306 + $0x20] sm:$0xff]
          %v1090 = vld [vmem:[%s306 + $0x28] sm:$0xff]
          %v1091 = vld [vmem:[%s306 + $0x30] sm:$0xff]
          %v1092 = vld [vmem:[%s306 + $0x38] sm:$0xff]
          %v1093 = vld [vmem:[%s306 + $0x40] sm:$0xff]
          %v1094 = vld [vmem:[%s306 + $0x48] sm:$0xff]
          %v1095 = vld [vmem:[%s306 + $0x50] sm:$0xff]
          %v1096 = vld [vmem:[%s306 + $0x58] sm:$0xff]
          %v1097 = vld [vmem:[%s306 + $0x60] sm:$0xff]
          %v1098 = vld [vmem:[%s306 + $0x68] sm:$0xff]
          %v1099 = vld [vmem:[%s306 + $0x70] sm:$0xff]
          %v1100 = vld [vmem:[%s306 + $0x78] sm:$0xff]
          %v1101 = vadd.f32 %v1085, %v989
          %v1102 = vadd.f32 %v1086, %v990
          %v1103 = vadd.f32 %v1087, %v991
          %v1104 = vadd.f32 %v1088, %v992
          %v1105 = vadd.f32 %v1089, %v993
          %v1106 = vadd.f32 %v1090, %v994
          %v1107 = vadd.f32 %v1091, %v995
          %v1108 = vadd.f32 %v1092, %v996
          %v1109 = vadd.f32 %v1093, %v997
          %v1110 = vadd.f32 %v1094, %v998
          %v1111 = vadd.f32 %v1095, %v999
          %v1112 = vadd.f32 %v1096, %v1000
          %v1113 = vadd.f32 %v1097, %v1001
          %v1114 = vadd.f32 %v1098, %v1002
          %v1115 = vadd.f32 %v1099, %v1003
          %v1116 = vadd.f32 %v1100, %v1004
          %1117 = vst [vmem:[%s313] sm:$0xff] %v1101
          %1118 = vst [vmem:[%s313 + $0x8] sm:$0xff] %v1102
          %1119 = vst [vmem:[%s313 + $0x10] sm:$0xff] %v1103
          %1120 = vst [vmem:[%s313 + $0x18] sm:$0xff] %v1104
          %1121 = vst [vmem:[%s313 + $0x20] sm:$0xff] %v1105
          %1122 = vst [vmem:[%s313 + $0x28] sm:$0xff] %v1106
          %1123 = vst [vmem:[%s313 + $0x30] sm:$0xff] %v1107
          %1124 = vst [vmem:[%s313 + $0x38] sm:$0xff] %v1108
          %1125 = vst [vmem:[%s313 + $0x40] sm:$0xff] %v1109
          %1126 = vst [vmem:[%s313 + $0x48] sm:$0xff] %v1110
          %1127 = vst [vmem:[%s313 + $0x50] sm:$0xff] %v1111
          %1128 = vst [vmem:[%s313 + $0x58] sm:$0xff] %v1112
          %1129 = vst [vmem:[%s313 + $0x60] sm:$0xff] %v1113
          %1130 = vst [vmem:[%s313 + $0x68] sm:$0xff] %v1114
          %1131 = vst [vmem:[%s313 + $0x70] sm:$0xff] %v1115
          %1132 = vst [vmem:[%s313 + $0x78] sm:$0xff] %v1116
        $region44: #{gcmc_forward.5} parent=35 // pred_fallthru
          _
        %s1133 = sand.u32 %s141, 1
        %s1134 = scalar_lea.sflag [#allocation4], %s1133
        %s1135 = sand.u32 %s141, 1
        %s1136 = smul.addr %s1135, 64
        %s1137 = scalar_lea.vmem [#allocation3], %s1136
        %s1138 = smul.u32 16, %s24
        %p1139 = scmp.lt.s32.totalorder %s1138, 31
        %s1140 = scalar_select %p1139, %s1138, 31
        %s1141 = smul.addr %s1140, 8
        %s1142 = scalar_lea.vmem %s5, %s1141
        // Predicated region
        $region45: #{gcmc_forward.5} parent=35 // pred_check
          %p1143 = pneg %p151
        $region46: #{gcmc_forward.5} parent=35 // pred_check_branch
          %1145 = sbr.rel (%p1143) target = $region48
        $region47: #{gcmc_forward.5} parent=35 // pred_region
          %s1146 = smul.u32 16, %s24
          %s1148 = ssub.s32 1024, 1024
          %1149 = vsyncadd %s1134, %s1148
          %s1150 = smul.addr %s1146, 64
          %s1151 = scalar_lea.hbm %s4, %s1150
          %s1152 = sshll.u32 %s1137, 4
          %s1153 = int_to_ptr.vmem [resolvable:$true] %s1152
          %1158 = dma.vmem_to_hbm [thread:$0]  %s1153, 1024, %s1151, %s1134, 64, 64, 4
        $region48: #{gcmc_forward.5} parent=35 // pred_fallthru
          _
        // Predicated region
        $region49: #{gcmc_forward.5} parent=35 // pred_check
          %p1159 = pneg %p177
        $region50: #{gcmc_forward.5} parent=35 // pred_check_branch
          %1161 = sbr.rel (%p1159) target = $region52
        $region51: #{gcmc_forward.5} parent=35 // pred_region
          %s1162 = smul.u32 16, %s24
        $region52: #{gcmc_forward.5} parent=35 // pred_fallthru
          _
      $region36: #{gcmc_forward.5} parent=5 // pred_fallthru
        _
      %p1163 = scmp.le.s32.totalorder 2, %s15
      // Predicated region
      $region53: #{gcmc_forward.5} parent=5 // pred_check
        %p1164 = pneg %p1163
      $region54: #{gcmc_forward.5} parent=5 // pred_check_branch
        %1166 = sbr.rel (%p1164) target = $region56
      $region55: #{gcmc_forward.5} parent=5 // pred_region
        %s1167 = ssub.s32 %s15, 2
        // Predicated region
        $region57: #{gcmc_forward.5} parent=55 // pred_check
          %p1168 = pneg %p157
        $region58: #{gcmc_forward.5} parent=55 // pred_check_branch
          %1170 = sbr.rel (%p1168) target = $region60
        $region59: #{gcmc_forward.5} parent=55 // pred_region
          %s1171 = sand.u32 %s142, 1
          %s1172 = scalar_lea.sflag [#allocation4], %s1171
          %s1173 = sand.u32 %s142, 1
          %s1174 = smul.addr %s1173, 64
          %s1175 = scalar_lea.vmem [#allocation3], %s1174
          %1176 = dma.done %s1172, 1024
        $region60: #{gcmc_forward.5} parent=55 // pred_fallthru
          _
        // Predicated region
        $region61: #{gcmc_forward.5} parent=55 // pred_check
          %p1177 = pneg %p183
        $region62: #{gcmc_forward.5} parent=55 // pred_check_branch
          %1179 = sbr.rel (%p1177) target = $region64
        $region63: #{gcmc_forward.5} parent=55 // pred_region
          %s1180 = smul.u32 16, %s26
          %p1181 = scmp.lt.s32.totalorder %s1180, 31
          %s1182 = scalar_select %p1181, %s1180, 31
          %s1183 = smul.addr %s1182, 8
          %s1184 = scalar_lea.vmem %s5, %s1183
        $region64: #{gcmc_forward.5} parent=55 // pred_fallthru
          _
      $region56: #{gcmc_forward.5} parent=5 // pred_fallthru
        _
    $region6: #{gcmc_forward.5} parent=1 // loop_footer
      %s19 = sadd.s32 1, %s15
    $region7: #{gcmc_forward.5} parent=1 // loop_footer_branch
      %14 = sbr.rel target = $region3
    $region8: #{gcmc_forward.5} parent=1 // loop_exit
      _
    %1185 = vsyncpa [#allocation4], 1
    %s1186 = scalar_lea.sflag [#allocation4], 1
    %1187 = vsyncpa %s1186, 1

// kernel: gcmc_forward.3
$region0: #{gcmc_forward.3}
  #allocation0 [shape = 'u32[]', space=smem, size = 0x4, offset = 0x4, fixed_abs, tag = 'smem constant byte address 0x4 - core index']
  #allocation1 [shape = 'u32[144,128]{1,0:T(1,128)}', space=vmem, size = 0x12000, scoped, tag = 'internal scratch']
  #allocation2 [shape = 'f32[128,128]{1,0:T(8,128)}', space=vmem, size = 0x10000, scoped, tag = 'scratch operand']
  %s0 = inlined_call_operand.vmem [shape: bf16[256,256], index: 0, kind: input, shape index: {}]
  %s1 = inlined_call_operand.vmem [shape: bf16[256,128], index: 1, kind: input, shape index: {}]
  %s2 = inlined_call_operand.vmem [shape: bf16[128,128], index: 2, kind: input, shape index: {}]
  %s3 = inlined_call_operand.vmem [shape: f32[256,128], index: 3, kind: input, shape index: {}, may-alias: {3,5}]
  %s4 = inlined_call_operand.vmem [shape: bf16[256,128], index: 4, kind: output, shape index: {0}]
  %s5 = inlined_call_operand.vmem [shape: f32[256,128], index: 5, kind: output, shape index: {1}, may-alias: {3,5}]
  %6 = xla_tuple %s4, %s5
  %s7 = sld [smem:[#allocation0]]
  $region65: #{gcmc_forward.3} parent=0
    _
  %s9 = ssub.s32 1, %s7
  %s10 = scalar_select 0, %s9, %s7
  loop: start=0, step=1, limit=4
  $region2: #{gcmc_forward.3} parent=0 // loop_pre_header
    _
  $region3: #{gcmc_forward.3} parent=0 // loop_header
    %s12 = sphi 0, %s16
    %p13 = scmp.ge.s32.totalorder %s12, 4
    %s19 = sphi 0, %s31
    %s20 = sphi 0, %s27
    %s21 = sphi 0, %s19
    %s22 = sphi 0, %s20
    %s23 = sphi 0, %s21
    %s24 = sphi 0, %s22
    %s36 = sphi 0, %s38
    %s39 = sphi 0, %s36
    %s40 = sphi 0, %s39
    %s56 = sphi 0, %s40
    %s62 = sphi 0, %s64
    %s65 = sphi 0, %s62
    %s66 = sphi 0, %s65
    %s82 = sphi 0, %s66
    %s86 = sphi 0, %s86
    %s88 = sphi 0, %s86
    %s89 = sphi 0, %s88
    %s103 = sphi 0, %s89
    %s109 = sphi 0, %s111
    %s112 = sphi 0, %s109
    %s113 = sphi 0, %s112
    %s129 = sphi 0, %s113
    %s135 = sphi 0, %s137
    %s138 = sphi 0, %s135
    %s139 = sphi 0, %s138
    %s155 = sphi 0, %s139
    %s161 = sphi 0, %s163
    %s164 = sphi 0, %s161
    %s165 = sphi 0, %s164
    %s181 = sphi 0, %s165
  $region4: #{gcmc_forward.3} parent=0 // loop_header_branch
    %15 = sbr.rel (%p13) target = $region8
  $region5: #{gcmc_forward.3} parent=0 // loop_body
    %s17 = ssub.s32 %s12, 1
    %s18 = ssub.s32 %s12, 2
    %s25 = sadd.s32 1, %s20
    %p26 = scmp.ge.s32.totalorder %s25, 1
    %s27 = scalar_select %p26, 0, %s25
    %s28 = sadd.s32 1, %s19
    %s29 = scalar_select %p26, %s28, %s19
    %p30 = scmp.ge.s32.totalorder %s29, 2
    %s31 = scalar_select %p30, 0, %s29
    %s32 = ssub.s32 %s19, %s31
    %s33 = ssub.s32 %s20, %s27
    %s34 = sor.u32 %s32, %s33
    %p35 = scmp.eq.s32.totalorder %s34, 0
    %s37 = sadd.s32 %s36, 1
    %s38 = scalar_select %p35, %s36, %s37
    %p41 = pneg %p35
    %p42 = scmp.eq.s32.totalorder %s12, 1
    %p43 = por %p41, %p42
    %p44 = scmp.ne.s32.totalorder %s36, %s39
    %p45 = scmp.eq.s32.totalorder %s12, 0
    %p46 = por %p44, %p45
    %p47 = scmp.ne.s32.totalorder %s36, %s39
    %p48 = scmp.eq.s32.totalorder %s17, 1
    %p49 = por %p47, %p48
    %p50 = scmp.ne.s32.totalorder %s39, %s40
    %p51 = scmp.eq.s32.totalorder %s17, 0
    %p52 = por %p50, %p51
    %p53 = scmp.ne.s32.totalorder %s39, %s40
    %p54 = scmp.eq.s32.totalorder %s18, 1
    %p55 = por %p53, %p54
    %p57 = scmp.ne.s32.totalorder %s40, %s56
    %p58 = scmp.eq.s32.totalorder %s18, 0
    %p59 = por %p57, %p58
    %s60 = ssub.s32 %s20, %s27
    %p61 = scmp.eq.s32.totalorder %s60, 0
    %s63 = sadd.s32 %s62, 1
    %s64 = scalar_select %p61, %s62, %s63
    %p67 = pneg %p61
    %p68 = scmp.eq.s32.totalorder %s12, 1
    %p69 = por %p67, %p68
    %p70 = scmp.ne.s32.totalorder %s62, %s65
    %p71 = scmp.eq.s32.totalorder %s12, 0
    %p72 = por %p70, %p71
    %p73 = scmp.ne.s32.totalorder %s62, %s65
    %p74 = scmp.eq.s32.totalorder %s17, 1
    %p75 = por %p73, %p74
    %p76 = scmp.ne.s32.totalorder %s65, %s66
    %p77 = scmp.eq.s32.totalorder %s17, 0
    %p78 = por %p76, %p77
    %p79 = scmp.ne.s32.totalorder %s65, %s66
    %p80 = scmp.eq.s32.totalorder %s18, 1
    %p81 = por %p79, %p80
    %p83 = scmp.ne.s32.totalorder %s66, %s82
    %p84 = scmp.eq.s32.totalorder %s18, 0
    %p85 = por %p83, %p84
    %s87 = sadd.s32 %s86, 1
    %p90 = scmp.eq.s32.totalorder %s12, 1
    %p91 = scmp.ne.s32.totalorder %s86, %s88
    %p92 = scmp.eq.s32.totalorder %s12, 0
    %p93 = por %p91, %p92
    %p94 = scmp.ne.s32.totalorder %s86, %s88
    %p95 = scmp.eq.s32.totalorder %s17, 1
    %p96 = por %p94, %p95
    %p97 = scmp.ne.s32.totalorder %s88, %s89
    %p98 = scmp.eq.s32.totalorder %s17, 0
    %p99 = por %p97, %p98
    %p100 = scmp.ne.s32.totalorder %s88, %s89
    %p101 = scmp.eq.s32.totalorder %s18, 1
    %p102 = por %p100, %p101
    %p104 = scmp.ne.s32.totalorder %s89, %s103
    %p105 = scmp.eq.s32.totalorder %s18, 0
    %p106 = por %p104, %p105
    %s107 = ssub.s32 %s19, %s31
    %p108 = scmp.eq.s32.totalorder %s107, 0
    %s110 = sadd.s32 %s109, 1
    %s111 = scalar_select %p108, %s109, %s110
    %p114 = pneg %p108
    %p115 = scmp.eq.s32.totalorder %s12, 1
    %p116 = por %p114, %p115
    %p117 = scmp.ne.s32.totalorder %s109, %s112
    %p118 = scmp.eq.s32.totalorder %s12, 0
    %p119 = por %p117, %p118
    %p120 = scmp.ne.s32.totalorder %s109, %s112
    %p121 = scmp.eq.s32.totalorder %s17, 1
    %p122 = por %p120, %p121
    %p123 = scmp.ne.s32.totalorder %s112, %s113
    %p124 = scmp.eq.s32.totalorder %s17, 0
    %p125 = por %p123, %p124
    %p126 = scmp.ne.s32.totalorder %s112, %s113
    %p127 = scmp.eq.s32.totalorder %s18, 1
    %p128 = por %p126, %p127
    %p130 = scmp.ne.s32.totalorder %s113, %s129
    %p131 = scmp.eq.s32.totalorder %s18, 0
    %p132 = por %p130, %p131
    %s133 = ssub.s32 %s19, %s31
    %p134 = scmp.eq.s32.totalorder %s133, 0
    %s136 = sadd.s32 %s135, 1
    %s137 = scalar_select %p134, %s135, %s136
    %p140 = pneg %p134
    %p141 = scmp.eq.s32.totalorder %s12, 1
    %p142 = por %p140, %p141
    %p143 = scmp.ne.s32.totalorder %s135, %s138
    %p144 = scmp.eq.s32.totalorder %s12, 0
    %p145 = por %p143, %p144
    %p146 = scmp.ne.s32.totalorder %s135, %s138
    %p147 = scmp.eq.s32.totalorder %s17, 1
    %p148 = por %p146, %p147
    %p149 = scmp.ne.s32.totalorder %s138, %s139
    %p150 = scmp.eq.s32.totalorder %s17, 0
    %p151 = por %p149, %p150
    %p152 = scmp.ne.s32.totalorder %s138, %s139
    %p153 = scmp.eq.s32.totalorder %s18, 1
    %p154 = por %p152, %p153
    %p156 = scmp.ne.s32.totalorder %s139, %s155
    %p157 = scmp.eq.s32.totalorder %s18, 0
    %p158 = por %p156, %p157
    %s159 = ssub.s32 %s19, %s31
    %p160 = scmp.eq.s32.totalorder %s159, 0
    %s162 = sadd.s32 %s161, 1
    %s163 = scalar_select %p160, %s161, %s162
    %p166 = pneg %p160
    %p167 = scmp.eq.s32.totalorder %s12, 1
    %p168 = por %p166, %p167
    %p169 = scmp.ne.s32.totalorder %s161, %s164
    %p170 = scmp.eq.s32.totalorder %s12, 0
    %p171 = por %p169, %p170
    %p172 = scmp.ne.s32.totalorder %s161, %s164
    %p173 = scmp.eq.s32.totalorder %s17, 1
    %p174 = por %p172, %p173
    %p175 = scmp.ne.s32.totalorder %s164, %s165
    %p176 = scmp.eq.s32.totalorder %s17, 0
    %p177 = por %p175, %p176
    %p178 = scmp.ne.s32.totalorder %s164, %s165
    %p179 = scmp.eq.s32.totalorder %s18, 1
    %p180 = por %p178, %p179
    %p182 = scmp.ne.s32.totalorder %s165, %s181
    %p183 = scmp.eq.s32.totalorder %s18, 0
    %p184 = por %p182, %p183
    %p185 = scmp.le.s32.totalorder 1, %s12
    %p186 = scmp.lt.s32.totalorder %s12, 3
    %p187 = pnand %p185, %p186
    %p188 = pneg %p187
    // Predicated region
    $region9: #{gcmc_forward.3} parent=5 // pred_check
      _
    $region10: #{gcmc_forward.3} parent=5 // pred_check_branch
      %190 = sbr.rel (%p187) target = $region12
    $region11: #{gcmc_forward.3} parent=5 // pred_region
      %s191 = ssub.s32 %s12, 1
      // Predicated region
      $region13: #{gcmc_forward.3} parent=11 // pred_check
        %p192 = pneg %p78
      $region14: #{gcmc_forward.3} parent=11 // pred_check_branch
        %194 = sbr.rel (%p192) target = $region16
      $region15: #{gcmc_forward.3} parent=11 // pred_region
        %s195 = smul.u32 32, %s22
        %p196 = scmp.lt.s32.totalorder %s195, 31
        %s197 = scalar_select %p196, %s195, 31
        %s198 = smul.addr %s197, 4
        %s199 = scalar_lea.vmem %s1, %s198
        %s200 = smul.u32 32, %s22
      $region16: #{gcmc_forward.3} parent=11 // pred_fallthru
        _
      // Predicated region
      $region17: #{gcmc_forward.3} parent=11 // pred_check
        %p201 = pneg %p99
      $region18: #{gcmc_forward.3} parent=11 // pred_check_branch
        %203 = sbr.rel (%p201) target = $region20
      $region19: #{gcmc_forward.3} parent=11 // pred_region
        _
      $region20: #{gcmc_forward.3} parent=11 // pred_fallthru
        _
    $region12: #{gcmc_forward.3} parent=5 // pred_fallthru
      _
    %p204 = scmp.lt.s32.totalorder %s12, 2
    // Predicated region
    $region21: #{gcmc_forward.3} parent=5 // pred_check
      %p205 = pneg %p204
    $region22: #{gcmc_forward.3} parent=5 // pred_check_branch
      %207 = sbr.rel (%p205) target = $region24
    $region23: #{gcmc_forward.3} parent=5 // pred_region
      // Predicated region
      $region25: #{gcmc_forward.3} parent=23 // pred_check
        %p208 = pneg %p46
      $region26: #{gcmc_forward.3} parent=23 // pred_check_branch
        %210 = sbr.rel (%p208) target = $region28
      $region27: #{gcmc_forward.3} parent=23 // pred_region
        %s211 = smul.u32 16, %s19
        %s212 = smul.u32 2, %s20
        %p213 = scmp.lt.s32.totalorder %s211, 31
        %s214 = scalar_select %p213, %s211, 31
        %p215 = scmp.lt.s32.totalorder %s212, 1
        %s216 = scalar_select %p215, %s212, 1
        %s217 = smul.addr %s214, 2
        %s218 = sadd.s32 %s216, %s217
        %s219 = smul.addr %s218, 4
        %s220 = scalar_lea.vmem %s0, %s219
        %s221 = smul.u32 16, %s19
        %s222 = smul.u32 2, %s20
      $region28: #{gcmc_forward.3} parent=23 // pred_fallthru
        _
      // Predicated region
      $region29: #{gcmc_forward.3} parent=23 // pred_check
        %p223 = pneg %p119
      $region30: #{gcmc_forward.3} parent=23 // pred_check_branch
        %225 = sbr.rel (%p223) target = $region32
      $region31: #{gcmc_forward.3} parent=23 // pred_region
        %s226 = smul.u32 16, %s19
        %p227 = scmp.lt.s32.totalorder %s226, 31
        %s228 = scalar_select %p227, %s226, 31
        %s229 = smul.addr %s228, 8
        %s230 = scalar_lea.vmem %s3, %s229
        %s231 = smul.u32 16, %s19
      $region32: #{gcmc_forward.3} parent=23 // pred_fallthru
        _
    $region24: #{gcmc_forward.3} parent=5 // pred_fallthru
      _
    %p232 = scmp.le.s32.totalorder 1, %s12
    %p233 = scmp.lt.s32.totalorder %s12, 3
    %p234 = pnand %p232, %p233
    %p235 = pneg %p234
    // Predicated region
    $region33: #{gcmc_forward.3} parent=5 // pred_check
      _
    $region34: #{gcmc_forward.3} parent=5 // pred_check_branch
      %237 = sbr.rel (%p234) target = $region36
    $region35: #{gcmc_forward.3} parent=5 // pred_region
      %s238 = ssub.s32 %s12, 1
      %s239 = smul.u32 16, %s21
      %s240 = smul.u32 2, %s22
      %p241 = scmp.lt.s32.totalorder %s239, 31
      %s242 = scalar_select %p241, %s239, 31
      %p243 = scmp.lt.s32.totalorder %s240, 1
      %s244 = scalar_select %p243, %s240, 1
      %s245 = smul.addr %s242, 2
      %s246 = sadd.s32 %s244, %s245
      %s247 = smul.addr %s246, 4
      %s248 = scalar_lea.vmem %s0, %s247
      %p249 = pneg %p52
      %p250 = pneg %p49
      %s251 = smul.u32 32, %s22
      %p252 = scmp.lt.s32.totalorder %s251, 31
      %s253 = scalar_select %p252, %s251, 31
      %s254 = smul.addr %s253, 4
      %s255 = scalar_lea.vmem %s1, %s254
      %p256 = pneg %p78
      %p257 = pneg %p75
      %p258 = pneg %p99
      %p259 = pneg %p96
      %s260 = smul.u32 16, %s21
      %p261 = scmp.lt.s32.totalorder %s260, 31
      %s262 = scalar_select %p261, %s260, 31
      %s263 = smul.addr %s262, 8
      %s264 = scalar_lea.vmem %s3, %s263
      %p265 = pneg %p125
      %p266 = pneg %p122
      %p267 = pneg %p151
      %p268 = pneg %p148
      %s269 = smul.u32 16, %s21
      %p270 = scmp.lt.s32.totalorder %s269, 31
      %s271 = scalar_select %p270, %s269, 31
      %s272 = smul.addr %s271, 4
      %s273 = scalar_lea.vmem %s4, %s272
      %p274 = pneg %p177
      %p275 = pneg %p174
      %s276 = smul.u32 16, %s21
      %p277 = scmp.lt.s32.totalorder %s276, 31
      %s278 = scalar_select %p277, %s276, 31
      %s279 = smul.addr %s278, 8
      %s280 = scalar_lea.vmem %s5, %s279
      %s281 = smul.u32 16, %s21
      %s282 = smul.u32 2, %s22
      %p283 = scmp.lt.s32.totalorder %s281, 31
      %s284 = scalar_select %p283, %s281, 31
      %p285 = scmp.lt.s32.totalorder %s282, 1
      %s286 = scalar_select %p285, %s282, 1
      %s287 = smul.addr %s284, 2
      %s288 = sadd.s32 %s286, %s287
      %s289 = smul.addr %s288, 4
      %s290 = scalar_lea.vmem %s0, %s289
      %s291 = smul.u32 16, %s21
      %s292 = smul.u32 2, %s22
      %s293 = smul.u32 32, %s22
      %p294 = scmp.lt.s32.totalorder %s293, 31
      %s295 = scalar_select %p294, %s293, 31
      %s296 = smul.addr %s295, 4
      %s297 = scalar_lea.vmem %s1, %s296
      %s298 = smul.u32 32, %s22
      %s299 = smul.u32 16, %s21
      %p300 = scmp.lt.s32.totalorder %s299, 31
      %s301 = scalar_select %p300, %s299, 31
      %s302 = smul.addr %s301, 8
      %s303 = scalar_lea.vmem %s3, %s302
      %s304 = smul.u32 16, %s21
      %s305 = smul.u32 16, %s21
      %p306 = scmp.lt.s32.totalorder %s305, 31
      %s307 = scalar_select %p306, %s305, 31
      %s308 = smul.addr %s307, 4
      %s309 = scalar_lea.vmem %s4, %s308
      %s310 = smul.u32 16, %s21
      %s311 = smul.u32 16, %s21
      %p312 = scmp.lt.s32.totalorder %s311, 31
      %s313 = scalar_select %p312, %s311, 31
      %s314 = smul.addr %s313, 8
      %s315 = scalar_lea.vmem %s5, %s314
      %s316 = smul.u32 16, %s21
      %p318 = scmp.eq.s32.totalorder %s22, 0
      // Predicated region
      $region37: #{gcmc_forward.3} parent=35 // pred_check
        %p319 = pneg %p318
      $region38: #{gcmc_forward.3} parent=35 // pred_check_branch
        %321 = sbr.rel (%p319) target = $region40
      $region39: #{gcmc_forward.3} parent=35 // pred_region
        %322 = vst [vmem:[#allocation2] sm:$0xff] 0.0
        %323 = vst [vmem:[#allocation2 + $0x8] sm:$0xff] 0.0
        %324 = vst [vmem:[#allocation2 + $0x10] sm:$0xff] 0.0
        %325 = vst [vmem:[#allocation2 + $0x18] sm:$0xff] 0.0
        %326 = vst [vmem:[#allocation2 + $0x20] sm:$0xff] 0.0
        %327 = vst [vmem:[#allocation2 + $0x28] sm:$0xff] 0.0
        %328 = vst [vmem:[#allocation2 + $0x30] sm:$0xff] 0.0
        %329 = vst [vmem:[#allocation2 + $0x38] sm:$0xff] 0.0
        %330 = vst [vmem:[#allocation2 + $0x40] sm:$0xff] 0.0
        %331 = vst [vmem:[#allocation2 + $0x48] sm:$0xff] 0.0
        %332 = vst [vmem:[#allocation2 + $0x50] sm:$0xff] 0.0
        %333 = vst [vmem:[#allocation2 + $0x58] sm:$0xff] 0.0
        %334 = vst [vmem:[#allocation2 + $0x60] sm:$0xff] 0.0
        %335 = vst [vmem:[#allocation2 + $0x68] sm:$0xff] 0.0
        %336 = vst [vmem:[#allocation2 + $0x70] sm:$0xff] 0.0
        %337 = vst [vmem:[#allocation2 + $0x78] sm:$0xff] 0.0
      $region40: #{gcmc_forward.3} parent=35 // pred_fallthru
        _
      %v338 = vld [vmem:[#allocation2] sm:$0xff]
      %v339 = vld [vmem:[#allocation2 + $0x8] sm:$0xff]
      %v340 = vld [vmem:[#allocation2 + $0x10] sm:$0xff]
      %v341 = vld [vmem:[#allocation2 + $0x18] sm:$0xff]
      %v342 = vld [vmem:[#allocation2 + $0x20] sm:$0xff]
      %v343 = vld [vmem:[#allocation2 + $0x28] sm:$0xff]
      %v344 = vld [vmem:[#allocation2 + $0x30] sm:$0xff]
      %v345 = vld [vmem:[#allocation2 + $0x38] sm:$0xff]
      %v346 = vld [vmem:[#allocation2 + $0x40] sm:$0xff]
      %v347 = vld [vmem:[#allocation2 + $0x48] sm:$0xff]
      %v348 = vld [vmem:[#allocation2 + $0x50] sm:$0xff]
      %v349 = vld [vmem:[#allocation2 + $0x58] sm:$0xff]
      %v350 = vld [vmem:[#allocation2 + $0x60] sm:$0xff]
      %v351 = vld [vmem:[#allocation2 + $0x68] sm:$0xff]
      %v352 = vld [vmem:[#allocation2 + $0x70] sm:$0xff]
      %v353 = vld [vmem:[#allocation2 + $0x78] sm:$0xff]
      %v354 = vld [vmem:[%s290] sm:$0xff]
      %v355 = vld [vmem:[%s290 + $0x8] sm:$0xff]
      %v356 = vld [vmem:[%s290 + $0x10] sm:$0xff]
      %v357 = vld [vmem:[%s290 + $0x18] sm:$0xff]
      %v358 = vld [vmem:[%s290 + $0x20] sm:$0xff]
      %v359 = vld [vmem:[%s290 + $0x28] sm:$0xff]
      %v360 = vld [vmem:[%s290 + $0x30] sm:$0xff]
      %v361 = vld [vmem:[%s290 + $0x38] sm:$0xff]
      %v362 = vld [vmem:[%s290 + $0x40] sm:$0xff]
      %v363 = vld [vmem:[%s290 + $0x48] sm:$0xff]
      %v364 = vld [vmem:[%s290 + $0x50] sm:$0xff]
      %v365 = vld [vmem:[%s290 + $0x58] sm:$0xff]
      %v366 = vld [vmem:[%s290 + $0x60] sm:$0xff]
      %v367 = vld [vmem:[%s290 + $0x68] sm:$0xff]
      %v368 = vld [vmem:[%s290 + $0x70] sm:$0xff]
      %v369 = vld [vmem:[%s290 + $0x78] sm:$0xff]
      %v370 = vld [vmem:[%s297] sm:$0xf]
      %v371 = vld [vmem:[%s297 + $0x4] sm:$0xf]
      %v372 = vld [vmem:[%s297 + $0x8] sm:$0xf]
      %v373 = vld [vmem:[%s297 + $0xc] sm:$0xf]
      %v374 = vld [vmem:[%s297 + $0x10] sm:$0xf]
      %v375 = vld [vmem:[%s297 + $0x14] sm:$0xf]
      %v376 = vld [vmem:[%s297 + $0x18] sm:$0xf]
      %v377 = vld [vmem:[%s297 + $0x1c] sm:$0xf]
      %v378 = vld [vmem:[%s297 + $0x20] sm:$0xf]
      %v379 = vld [vmem:[%s297 + $0x24] sm:$0xf]
      %v380 = vld [vmem:[%s297 + $0x28] sm:$0xf]
      %v381 = vld [vmem:[%s297 + $0x2c] sm:$0xf]
      %v382 = vld [vmem:[%s297 + $0x30] sm:$0xf]
      %v383 = vld [vmem:[%s297 + $0x34] sm:$0xf]
      %v384 = vld [vmem:[%s297 + $0x38] sm:$0xf]
      %v385 = vld [vmem:[%s297 + $0x3c] sm:$0xf]
      %v386 = vld [vmem:[%s297 + $0x40] sm:$0xf]
      %v387 = vld [vmem:[%s297 + $0x44] sm:$0xf]
      %v388 = vld [vmem:[%s297 + $0x48] sm:$0xf]
      %v389 = vld [vmem:[%s297 + $0x4c] sm:$0xf]
      %v390 = vld [vmem:[%s297 + $0x50] sm:$0xf]
      %v391 = vld [vmem:[%s297 + $0x54] sm:$0xf]
      %v392 = vld [vmem:[%s297 + $0x58] sm:$0xf]
      %v393 = vld [vmem:[%s297 + $0x5c] sm:$0xf]
      %v394 = vld [vmem:[%s297 + $0x60] sm:$0xf]
      %v395 = vld [vmem:[%s297 + $0x64] sm:$0xf]
      %v396 = vld [vmem:[%s297 + $0x68] sm:$0xf]
      %v397 = vld [vmem:[%s297 + $0x6c] sm:$0xf]
      %v398 = vld [vmem:[%s297 + $0x70] sm:$0xf]
      %v399 = vld [vmem:[%s297 + $0x74] sm:$0xf]
      %v400 = vld [vmem:[%s297 + $0x78] sm:$0xf]
      %v401 = vld [vmem:[%s297 + $0x7c] sm:$0xf]
      %v418 = vunpack.c.l.b16 %v354
      %v419 = vunpack.c.h.b16 %v354
      %v420 = vunpack.c.l.b16 %v355
      %v421 = vunpack.c.h.b16 %v355
      %v422 = vunpack.c.l.b16 %v356
      %v423 = vunpack.c.h.b16 %v356
      %v424 = vunpack.c.l.b16 %v357
      %v425 = vunpack.c.h.b16 %v357
      %v426 = vunpack.c.l.b16 %v358
      %v427 = vunpack.c.h.b16 %v358
      %v428 = vunpack.c.l.b16 %v359
      %v429 = vunpack.c.h.b16 %v359
      %v430 = vunpack.c.l.b16 %v360
      %v431 = vunpack.c.h.b16 %v360
      %v432 = vunpack.c.l.b16 %v361
      %v433 = vunpack.c.h.b16 %v361
      %v434 = vunpack.c.l.b16 %v362
      %v435 = vunpack.c.h.b16 %v362
      %v436 = vunpack.c.l.b16 %v363
      %v437 = vunpack.c.h.b16 %v363
      %v438 = vunpack.c.l.b16 %v364
      %v439 = vunpack.c.h.b16 %v364
      %v440 = vunpack.c.l.b16 %v365
      %v441 = vunpack.c.h.b16 %v365
      %v442 = vunpack.c.l.b16 %v366
      %v443 = vunpack.c.h.b16 %v366
      %v444 = vunpack.c.l.b16 %v367
      %v445 = vunpack.c.h.b16 %v367
      %v446 = vunpack.c.l.b16 %v368
      %v447 = vunpack.c.h.b16 %v368
      %v448 = vunpack.c.l.b16 %v369
      %v449 = vunpack.c.h.b16 %v369
      %v450 = vpack.c.b16 %v420, %v418
      %v451 = vpack.c.b16 %v421, %v419
      %v452 = vpack.c.b16 %v424, %v422
      %v453 = vpack.c.b16 %v425, %v423
      %v454 = vpack.c.b16 %v428, %v426
      %v455 = vpack.c.b16 %v429, %v427
      %v456 = vpack.c.b16 %v432, %v430
      %v457 = vpack.c.b16 %v433, %v431
      %v458 = vpack.c.b16 %v436, %v434
      %v459 = vpack.c.b16 %v437, %v435
      %v460 = vpack.c.b16 %v440, %v438
      %v461 = vpack.c.b16 %v441, %v439
      %v462 = vpack.c.b16 %v444, %v442
      %v463 = vpack.c.b16 %v445, %v443
      %v464 = vpack.c.b16 %v448, %v446
      %v465 = vpack.c.b16 %v449, %v447
      %v514 = vunpack.c.l.b16 %v370
      %v515 = vunpack.c.l.b16 %v371
      %v516 = vunpack.c.l.b16 %v372
      %v517 = vunpack.c.l.b16 %v373
      %v518 = vunpack.c.l.b16 %v374
      %v519 = vunpack.c.l.b16 %v375
      %v520 = vunpack.c.l.b16 %v376
      %v521 = vunpack.c.l.b16 %v377
      %v522 = vunpack.c.l.b16 %v378
      %v523 = vunpack.c.l.b16 %v379
      %v524 = vunpack.c.l.b16 %v380
      %v525 = vunpack.c.l.b16 %v381
      %v526 = vunpack.c.l.b16 %v382
      %v527 = vunpack.c.l.b16 %v383
      %v528 = vunpack.c.l.b16 %v384
      %v529 = vunpack.c.l.b16 %v385
      %v530 = vunpack.c.l.b16 %v386
      %v531 = vunpack.c.l.b16 %v387
      %v532 = vunpack.c.l.b16 %v388
      %v533 = vunpack.c.l.b16 %v389
      %v534 = vunpack.c.l.b16 %v390
      %v535 = vunpack.c.l.b16 %v391
      %v536 = vunpack.c.l.b16 %v392
      %v537 = vunpack.c.l.b16 %v393
      %v538 = vunpack.c.l.b16 %v394
      %v539 = vunpack.c.l.b16 %v395
      %v540 = vunpack.c.l.b16 %v396
      %v541 = vunpack.c.l.b16 %v397
      %v542 = vunpack.c.l.b16 %v398
      %v543 = vunpack.c.l.b16 %v399
      %v544 = vunpack.c.l.b16 %v400
      %v545 = vunpack.c.l.b16 %v401
      %v546 = vpack.c.b16 %v515, %v514
      %v547 = vpack.c.b16 %v517, %v516
      %v548 = vpack.c.b16 %v519, %v518
      %v549 = vpack.c.b16 %v521, %v520
      %v550 = vpack.c.b16 %v523, %v522
      %v551 = vpack.c.b16 %v525, %v524
      %v552 = vpack.c.b16 %v527, %v526
      %v553 = vpack.c.b16 %v529, %v528
      %v554 = vpack.c.b16 %v531, %v530
      %v555 = vpack.c.b16 %v533, %v532
      %v556 = vpack.c.b16 %v535, %v534
      %v557 = vpack.c.b16 %v537, %v536
      %v558 = vpack.c.b16 %v539, %v538
      %v559 = vpack.c.b16 %v541, %v540
      %v560 = vpack.c.b16 %v543, %v542
      %v561 = vpack.c.b16 %v545, %v544
      %578 = vmatprep.subr.bf16.mxu0 0
      %579 = vmatpush1.bf16.msra.mxu0 %v546
      %580 = vmatprep.subr.bf16.mxu0 0
      %581 = vmatpush1.bf16.msra.mxu0 %v547
      %582 = vmatprep.subr.bf16.mxu0 0
      %583 = vmatpush1.bf16.msra.mxu0 %v548
      %584 = vmatprep.subr.bf16.mxu0 0
      %585 = vmatpush1.bf16.msra.mxu0 %v549
      %586 = vmatprep.subr.bf16.mxu0 0
      %587 = vmatpush1.bf16.msra.mxu0 %v550
      %588 = vmatprep.subr.bf16.mxu0 0
      %589 = vmatpush1.bf16.msra.mxu0 %v551
      %590 = vmatprep.subr.bf16.mxu0 0
      %591 = vmatpush1.bf16.msra.mxu0 %v552
      %592 = vmatprep.subr.bf16.mxu0 0
      %593 = vmatpush1.bf16.msra.mxu0 %v553
      %594 = vmatprep.subr.bf16.mxu0 0
      %595 = vmatpush1.bf16.msra.mxu0 %v554
      %596 = vmatprep.subr.bf16.mxu0 0
      %597 = vmatpush1.bf16.msra.mxu0 %v555
      %598 = vmatprep.subr.bf16.mxu0 0
      %599 = vmatpush1.bf16.msra.mxu0 %v556
      %600 = vmatprep.subr.bf16.mxu0 0
      %601 = vmatpush1.bf16.msra.mxu0 %v557
      %602 = vmatprep.subr.bf16.mxu0 0
      %603 = vmatpush1.bf16.msra.mxu0 %v558
      %604 = vmatprep.subr.bf16.mxu0 0
      %605 = vmatpush1.bf16.msra.mxu0 %v559
      %606 = vmatprep.subr.bf16.mxu0 0
      %607 = vmatpush1.bf16.msra.mxu0 %v560
      %608 = vmatprep.subr.bf16.mxu0 0
      %609 = vmatpush1.bf16.msra.mxu0 %v561
      %610 = vmatprep.mubr.bf16.mxu0 %v451
      %611 = vmatmul.mubr.bf16.gmra.mrb[0].mxu0 %v450
      %v612 = vpop.f32.mrb[0].mxu0
      %v613 = vadd.f32 0.0, %v612
      %v614 = vpop.f32.mrb[0].mxu0
      %v615 = vpop.f32.mrb[0].mxu0
      %v616 = vadd.f32 0.0, %v615
      %v617 = vpop.f32.mrb[0].mxu0
      %618 = vmatprep.mubr.bf16.mxu0 %v453
      %619 = vmatmul.mubr.bf16.gmra.mrb[0].mxu0 %v452
      %v620 = vpop.f32.mrb[0].mxu0
      %v621 = vadd.f32 0.0, %v620
      %v622 = vpop.f32.mrb[0].mxu0
      %v623 = vpop.f32.mrb[0].mxu0
      %v624 = vadd.f32 0.0, %v623
      %v625 = vpop.f32.mrb[0].mxu0
      %626 = vmatprep.mubr.bf16.mxu0 %v455
      %627 = vmatmul.mubr.bf16.gmra.mrb[0].mxu0 %v454
      %v628 = vpop.f32.mrb[0].mxu0
      %v629 = vadd.f32 0.0, %v628
      %v630 = vpop.f32.mrb[0].mxu0
      %v631 = vpop.f32.mrb[0].mxu0
      %v632 = vadd.f32 0.0, %v631
      %v633 = vpop.f32.mrb[0].mxu0
      %634 = vmatprep.mubr.bf16.mxu0 %v457
      %635 = vmatmul.mubr.bf16.gmra.mrb[0].mxu0 %v456
      %v636 = vpop.f32.mrb[0].mxu0
      %v637 = vadd.f32 0.0, %v636
      %v638 = vpop.f32.mrb[0].mxu0
      %v639 = vpop.f32.mrb[0].mxu0
      %v640 = vadd.f32 0.0, %v639
      %v641 = vpop.f32.mrb[0].mxu0
      %642 = vmatprep.mubr.bf16.mxu0 %v459
      %643 = vmatmul.mubr.bf16.gmra.mrb[0].mxu0 %v458
      %v644 = vpop.f32.mrb[0].mxu0
      %v645 = vadd.f32 0.0, %v644
      %v646 = vpop.f32.mrb[0].mxu0
      %v647 = vpop.f32.mrb[0].mxu0
      %v648 = vadd.f32 0.0, %v647
      %v649 = vpop.f32.mrb[0].mxu0
      %650 = vmatprep.mubr.bf16.mxu0 %v461
      %651 = vmatmul.mubr.bf16.gmra.mrb[0].mxu0 %v460
      %v652 = vpop.f32.mrb[0].mxu0
      %v653 = vadd.f32 0.0, %v652
      %v654 = vpop.f32.mrb[0].mxu0
      %v655 = vpop.f32.mrb[0].mxu0
      %v656 = vadd.f32 0.0, %v655
      %v657 = vpop.f32.mrb[0].mxu0
      %658 = vmatprep.mubr.bf16.mxu0 %v463
      %659 = vmatmul.mubr.bf16.gmra.mrb[0].mxu0 %v462
      %v660 = vpop.f32.mrb[0].mxu0
      %v661 = vadd.f32 0.0, %v660
      %v662 = vpop.f32.mrb[0].mxu0
      %v663 = vpop.f32.mrb[0].mxu0
      %v664 = vadd.f32 0.0, %v663
      %v665 = vpop.f32.mrb[0].mxu0
      %666 = vmatprep.mubr.bf16.mxu0 %v465
      %667 = vmatmul.mubr.bf16.gmra.mrb[0].mxu0 %v464
      %v668 = vpop.f32.mrb[0].mxu0
      %v669 = vadd.f32 0.0, %v668
      %v670 = vpop.f32.mrb[0].mxu0
      %v671 = vpop.f32.mrb[0].mxu0
      %v672 = vadd.f32 0.0, %v671
      %v673 = vpop.f32.mrb[0].mxu0
      %674 = vdwg.mxu0
      %v675 = vadd.f32 %v338, %v613
      %v676 = vadd.f32 %v339, %v616
      %v677 = vadd.f32 %v340, %v621
      %v678 = vadd.f32 %v341, %v624
      %v679 = vadd.f32 %v342, %v629
      %v680 = vadd.f32 %v343, %v632
      %v681 = vadd.f32 %v344, %v637
      %v682 = vadd.f32 %v345, %v640
      %v683 = vadd.f32 %v346, %v645
      %v684 = vadd.f32 %v347, %v648
      %v685 = vadd.f32 %v348, %v653
      %v686 = vadd.f32 %v349, %v656
      %v687 = vadd.f32 %v350, %v661
      %v688 = vadd.f32 %v351, %v664
      %v689 = vadd.f32 %v352, %v669
      %v690 = vadd.f32 %v353, %v672
      %691 = vst [vmem:[#allocation2] sm:$0xff] %v675
      %692 = vst [vmem:[#allocation2 + $0x8] sm:$0xff] %v676
      %693 = vst [vmem:[#allocation2 + $0x10] sm:$0xff] %v677
      %694 = vst [vmem:[#allocation2 + $0x18] sm:$0xff] %v678
      %695 = vst [vmem:[#allocation2 + $0x20] sm:$0xff] %v679
      %696 = vst [vmem:[#allocation2 + $0x28] sm:$0xff] %v680
      %697 = vst [vmem:[#allocation2 + $0x30] sm:$0xff] %v681
      %698 = vst [vmem:[#allocation2 + $0x38] sm:$0xff] %v682
      %699 = vst [vmem:[#allocation2 + $0x40] sm:$0xff] %v683
      %700 = vst [vmem:[#allocation2 + $0x48] sm:$0xff] %v684
      %701 = vst [vmem:[#allocation2 + $0x50] sm:$0xff] %v685
      %702 = vst [vmem:[#allocation2 + $0x58] sm:$0xff] %v686
      %703 = vst [vmem:[#allocation2 + $0x60] sm:$0xff] %v687
      %704 = vst [vmem:[#allocation2 + $0x68] sm:$0xff] %v688
      %705 = vst [vmem:[#allocation2 + $0x70] sm:$0xff] %v689
      %706 = vst [vmem:[#allocation2 + $0x78] sm:$0xff] %v690
      // Predicated region
      $region41: #{gcmc_forward.3} parent=35 // pred_check
        %p707 = pneg %p318
      $region42: #{gcmc_forward.3} parent=35 // pred_check_branch
        %709 = sbr.rel (%p707) target = $region44
      $region43: #{gcmc_forward.3} parent=35 // pred_region
        %v710 = vld [vmem:[#allocation2] sm:$0xff]
        %v711 = vld [vmem:[#allocation2 + $0x8] sm:$0xff]
        %v712 = vld [vmem:[#allocation2 + $0x10] sm:$0xff]
        %v713 = vld [vmem:[#allocation2 + $0x18] sm:$0xff]
        %v714 = vld [vmem:[#allocation2 + $0x20] sm:$0xff]
        %v715 = vld [vmem:[#allocation2 + $0x28] sm:$0xff]
        %v716 = vld [vmem:[#allocation2 + $0x30] sm:$0xff]
        %v717 = vld [vmem:[#allocation2 + $0x38] sm:$0xff]
        %v718 = vld [vmem:[#allocation2 + $0x40] sm:$0xff]
        %v719 = vld [vmem:[#allocation2 + $0x48] sm:$0xff]
        %v720 = vld [vmem:[#allocation2 + $0x50] sm:$0xff]
        %v721 = vld [vmem:[#allocation2 + $0x58] sm:$0xff]
        %v722 = vld [vmem:[#allocation2 + $0x60] sm:$0xff]
        %v723 = vld [vmem:[#allocation2 + $0x68] sm:$0xff]
        %v724 = vld [vmem:[#allocation2 + $0x70] sm:$0xff]
        %v725 = vld [vmem:[#allocation2 + $0x78] sm:$0xff]
        %v726 = vpack.c.bf16 %v711, %v710
        %v727 = vpack.c.bf16 %v713, %v712
        %v728 = vpack.c.bf16 %v715, %v714
        %v729 = vpack.c.bf16 %v717, %v716
        %v730 = vpack.c.bf16 %v719, %v718
        %v731 = vpack.c.bf16 %v721, %v720
        %v732 = vpack.c.bf16 %v723, %v722
        %v733 = vpack.c.bf16 %v725, %v724
        %v734 = vld [vmem:[%s2] sm:$0xf]
        %v735 = vld [vmem:[%s2 + $0x4] sm:$0xf]
        %v736 = vld [vmem:[%s2 + $0x8] sm:$0xf]
        %v737 = vld [vmem:[%s2 + $0xc] sm:$0xf]
        %v738 = vld [vmem:[%s2 + $0x10] sm:$0xf]
        %v739 = vld [vmem:[%s2 + $0x14] sm:$0xf]
        %v740 = vld [vmem:[%s2 + $0x18] sm:$0xf]
        %v741 = vld [vmem:[%s2 + $0x1c] sm:$0xf]
        %v742 = vld [vmem:[%s2 + $0x20] sm:$0xf]
        %v743 = vld [vmem:[%s2 + $0x24] sm:$0xf]
        %v744 = vld [vmem:[%s2 + $0x28] sm:$0xf]
        %v745 = vld [vmem:[%s2 + $0x2c] sm:$0xf]
        %v746 = vld [vmem:[%s2 + $0x30] sm:$0xf]
        %v747 = vld [vmem:[%s2 + $0x34] sm:$0xf]
        %v748 = vld [vmem:[%s2 + $0x38] sm:$0xf]
        %v749 = vld [vmem:[%s2 + $0x3c] sm:$0xf]
        %v766 = vunpack.c.l.b16 %v734
        %v767 = vunpack.c.l.b16 %v735
        %v768 = vunpack.c.l.b16 %v736
        %v769 = vunpack.c.l.b16 %v737
        %v770 = vunpack.c.l.b16 %v738
        %v771 = vunpack.c.l.b16 %v739
        %v772 = vunpack.c.l.b16 %v740
        %v773 = vunpack.c.l.b16 %v741
        %v774 = vunpack.c.l.b16 %v742
        %v775 = vunpack.c.l.b16 %v743
        %v776 = vunpack.c.l.b16 %v744
        %v777 = vunpack.c.l.b16 %v745
        %v778 = vunpack.c.l.b16 %v746
        %v779 = vunpack.c.l.b16 %v747
        %v780 = vunpack.c.l.b16 %v748
        %v781 = vunpack.c.l.b16 %v749
        %v782 = vpack.c.b16 %v767, %v766
        %v783 = vpack.c.b16 %v769, %v768
        %v784 = vpack.c.b16 %v771, %v770
        %v785 = vpack.c.b16 %v773, %v772
        %v786 = vpack.c.b16 %v775, %v774
        %v787 = vpack.c.b16 %v777, %v776
        %v788 = vpack.c.b16 %v779, %v778
        %v789 = vpack.c.b16 %v781, %v780
        %798 = vmatprep.subr.bf16.mxu0 0
        %799 = vmatpush1.bf16.msra.mxu0 %v782
        %800 = vmatprep.subr.bf16.mxu0 0
        %801 = vmatpush1.bf16.msra.mxu0 %v783
        %802 = vmatprep.subr.bf16.mxu0 0
        %803 = vmatpush1.bf16.msra.mxu0 %v784
        %804 = vmatprep.subr.bf16.mxu0 0
        %805 = vmatpush1.bf16.msra.mxu0 %v785
        %806 = vmatprep.subr.bf16.mxu0 0
        %807 = vmatpush1.bf16.msra.mxu0 %v786
        %808 = vmatprep.subr.bf16.mxu0 0
        %809 = vmatpush1.bf16.msra.mxu0 %v787
        %810 = vmatprep.subr.bf16.mxu0 0
        %811 = vmatpush1.bf16.msra.mxu0 %v788
        %812 = vmatprep.subr.bf16.mxu0 0
        %813 = vmatpush1.bf16.msra.mxu0 %v789
        %814 = vmatprep.subr.bf16.mxu0 0
        %815 = vmatpush1.bf16.msra.mxu0 0
        %816 = vmatprep.subr.bf16.mxu0 0
        %817 = vmatpush1.bf16.msra.mxu0 0
        %818 = vmatprep.subr.bf16.mxu0 0
        %819 = vmatpush1.bf16.msra.mxu0 0
        %820 = vmatprep.subr.bf16.mxu0 0
        %821 = vmatpush1.bf16.msra.mxu0 0
        %822 = vmatprep.subr.bf16.mxu0 0
        %823 = vmatpush1.bf16.msra.mxu0 0
        %824 = vmatprep.subr.bf16.mxu0 0
        %825 = vmatpush1.bf16.msra.mxu0 0
        %826 = vmatprep.subr.bf16.mxu0 0
        %827 = vmatpush1.bf16.msra.mxu0 0
        %828 = vmatprep.subr.bf16.mxu0 0
        %829 = vmatpush1.bf16.msra.mxu0 0
        %830 = vmatprep.mubr.bf16.mxu0 0
        %831 = vmatmul.mubr.bf16.gmra.mrb[0].mxu0 %v726
        %v832 = vpop.f32.mrb[0].mxu0
        %v833 = vadd.f32 0.0, %v832
        %v834 = vpop.f32.mrb[0].mxu0
        %v835 = vpop.f32.mrb[0].mxu0
        %v836 = vadd.f32 0.0, %v835
        %v837 = vpop.f32.mrb[0].mxu0
        %838 = vmatprep.mubr.bf16.mxu0 0
        %839 = vmatmul.mubr.bf16.gmra.mrb[0].mxu0 %v727
        %v840 = vpop.f32.mrb[0].mxu0
        %v841 = vadd.f32 0.0, %v840
        %v842 = vpop.f32.mrb[0].mxu0
        %v843 = vpop.f32.mrb[0].mxu0
        %v844 = vadd.f32 0.0, %v843
        %v845 = vpop.f32.mrb[0].mxu0
        %846 = vmatprep.mubr.bf16.mxu0 0
        %847 = vmatmul.mubr.bf16.gmra.mrb[0].mxu0 %v728
        %v848 = vpop.f32.mrb[0].mxu0
        %v849 = vadd.f32 0.0, %v848
        %v850 = vpop.f32.mrb[0].mxu0
        %v851 = vpop.f32.mrb[0].mxu0
        %v852 = vadd.f32 0.0, %v851
        %v853 = vpop.f32.mrb[0].mxu0
        %854 = vmatprep.mubr.bf16.mxu0 0
        %855 = vmatmul.mubr.bf16.gmra.mrb[0].mxu0 %v729
        %v856 = vpop.f32.mrb[0].mxu0
        %v857 = vadd.f32 0.0, %v856
        %v858 = vpop.f32.mrb[0].mxu0
        %v859 = vpop.f32.mrb[0].mxu0
        %v860 = vadd.f32 0.0, %v859
        %v861 = vpop.f32.mrb[0].mxu0
        %862 = vmatprep.mubr.bf16.mxu0 0
        %863 = vmatmul.mubr.bf16.gmra.mrb[0].mxu0 %v730
        %v864 = vpop.f32.mrb[0].mxu0
        %v865 = vadd.f32 0.0, %v864
        %v866 = vpop.f32.mrb[0].mxu0
        %v867 = vpop.f32.mrb[0].mxu0
        %v868 = vadd.f32 0.0, %v867
        %v869 = vpop.f32.mrb[0].mxu0
        %870 = vmatprep.mubr.bf16.mxu0 0
        %871 = vmatmul.mubr.bf16.gmra.mrb[0].mxu0 %v731
        %v872 = vpop.f32.mrb[0].mxu0
        %v873 = vadd.f32 0.0, %v872
        %v874 = vpop.f32.mrb[0].mxu0
        %v875 = vpop.f32.mrb[0].mxu0
        %v876 = vadd.f32 0.0, %v875
        %v877 = vpop.f32.mrb[0].mxu0
        %878 = vmatprep.mubr.bf16.mxu0 0
        %879 = vmatmul.mubr.bf16.gmra.mrb[0].mxu0 %v732
        %v880 = vpop.f32.mrb[0].mxu0
        %v881 = vadd.f32 0.0, %v880
        %v882 = vpop.f32.mrb[0].mxu0
        %v883 = vpop.f32.mrb[0].mxu0
        %v884 = vadd.f32 0.0, %v883
        %v885 = vpop.f32.mrb[0].mxu0
        %886 = vmatprep.mubr.bf16.mxu0 0
        %887 = vmatmul.mubr.bf16.gmra.mrb[0].mxu0 %v733
        %v888 = vpop.f32.mrb[0].mxu0
        %v889 = vadd.f32 0.0, %v888
        %v890 = vpop.f32.mrb[0].mxu0
        %v891 = vpop.f32.mrb[0].mxu0
        %v892 = vadd.f32 0.0, %v891
        %v893 = vpop.f32.mrb[0].mxu0
        %894 = vdwg.mxu0
        %v895 = vmax.f32 %v833, 0.0
        %v896 = vmax.f32 %v836, 0.0
        %v897 = vmax.f32 %v841, 0.0
        %v898 = vmax.f32 %v844, 0.0
        %v899 = vmax.f32 %v849, 0.0
        %v900 = vmax.f32 %v852, 0.0
        %v901 = vmax.f32 %v857, 0.0
        %v902 = vmax.f32 %v860, 0.0
        %v903 = vmax.f32 %v865, 0.0
        %v904 = vmax.f32 %v868, 0.0
        %v905 = vmax.f32 %v873, 0.0
        %v906 = vmax.f32 %v876, 0.0
        %v907 = vmax.f32 %v881, 0.0
        %v908 = vmax.f32 %v884, 0.0
        %v909 = vmax.f32 %v889, 0.0
        %v910 = vmax.f32 %v892, 0.0
        %v911 = vmul.f32 %v895, %v895
        %v912 = vmul.f32 %v896, %v896
        %v913 = vmul.f32 %v897, %v897
        %v914 = vmul.f32 %v898, %v898
        %v915 = vmul.f32 %v899, %v899
        %v916 = vmul.f32 %v900, %v900
        %v917 = vmul.f32 %v901, %v901
        %v918 = vmul.f32 %v902, %v902
        %v919 = vmul.f32 %v903, %v903
        %v920 = vmul.f32 %v904, %v904
        %v921 = vmul.f32 %v905, %v905
        %v922 = vmul.f32 %v906, %v906
        %v923 = vmul.f32 %v907, %v907
        %v924 = vmul.f32 %v908, %v908
        %v925 = vmul.f32 %v909, %v909
        %v926 = vmul.f32 %v910, %v910
        %927 = vadd.xlane.f32.xlu0 %v911
        %v928 = vpop.xlane.xlu0 %927
        %929 = vadd.xlane.f32.xlu0 %v912
        %v930 = vpop.xlane.xlu0 %929
        %931 = vadd.xlane.f32.xlu0 %v913
        %v932 = vpop.xlane.xlu0 %931
        %933 = vadd.xlane.f32.xlu0 %v914
        %v934 = vpop.xlane.xlu0 %933
        %935 = vadd.xlane.f32.xlu0 %v915
        %v936 = vpop.xlane.xlu0 %935
        %937 = vadd.xlane.f32.xlu0 %v916
        %v938 = vpop.xlane.xlu0 %937
        %939 = vadd.xlane.f32.xlu0 %v917
        %v940 = vpop.xlane.xlu0 %939
        %941 = vadd.xlane.f32.xlu0 %v918
        %v942 = vpop.xlane.xlu0 %941
        %943 = vadd.xlane.f32.xlu0 %v919
        %v944 = vpop.xlane.xlu0 %943
        %945 = vadd.xlane.f32.xlu0 %v920
        %v946 = vpop.xlane.xlu0 %945
        %947 = vadd.xlane.f32.xlu0 %v921
        %v948 = vpop.xlane.xlu0 %947
        %949 = vadd.xlane.f32.xlu0 %v922
        %v950 = vpop.xlane.xlu0 %949
        %951 = vadd.xlane.f32.xlu0 %v923
        %v952 = vpop.xlane.xlu0 %951
        %953 = vadd.xlane.f32.xlu0 %v924
        %v954 = vpop.xlane.xlu0 %953
        %955 = vadd.xlane.f32.xlu0 %v925
        %v956 = vpop.xlane.xlu0 %955
        %957 = vadd.xlane.f32.xlu0 %v926
        %v958 = vpop.xlane.xlu0 %957
        %v959 = vmax.f32 %v928, 1e-24
        %v960 = vmax.f32 %v930, 1e-24
        %v961 = vmax.f32 %v932, 1e-24
        %v962 = vmax.f32 %v934, 1e-24
        %v963 = vmax.f32 %v936, 1e-24
        %v964 = vmax.f32 %v938, 1e-24
        %v965 = vmax.f32 %v940, 1e-24
        %v966 = vmax.f32 %v942, 1e-24
        %v967 = vmax.f32 %v944, 1e-24
        %v968 = vmax.f32 %v946, 1e-24
        %v969 = vmax.f32 %v948, 1e-24
        %v970 = vmax.f32 %v950, 1e-24
        %v971 = vmax.f32 %v952, 1e-24
        %v972 = vmax.f32 %v954, 1e-24
        %v973 = vmax.f32 %v956, 1e-24
        %v974 = vmax.f32 %v958, 1e-24
        %v975 = vrsqrt.pop %v959
        %v976 = vrsqrt.pop %v960
        %v977 = vrsqrt.pop %v961
        %v978 = vrsqrt.pop %v962
        %v979 = vrsqrt.pop %v963
        %v980 = vrsqrt.pop %v964
        %v981 = vrsqrt.pop %v965
        %v982 = vrsqrt.pop %v966
        %v983 = vrsqrt.pop %v967
        %v984 = vrsqrt.pop %v968
        %v985 = vrsqrt.pop %v969
        %v986 = vrsqrt.pop %v970
        %v987 = vrsqrt.pop %v971
        %v988 = vrsqrt.pop %v972
        %v989 = vrsqrt.pop %v973
        %v990 = vrsqrt.pop %v974
        %v991 = vmul.f32 %v895, %v975
        %v992 = vmul.f32 %v896, %v976
        %v993 = vmul.f32 %v897, %v977
        %v994 = vmul.f32 %v898, %v978
        %v995 = vmul.f32 %v899, %v979
        %v996 = vmul.f32 %v900, %v980
        %v997 = vmul.f32 %v901, %v981
        %v998 = vmul.f32 %v902, %v982
        %v999 = vmul.f32 %v903, %v983
        %v1000 = vmul.f32 %v904, %v984
        %v1001 = vmul.f32 %v905, %v985
        %v1002 = vmul.f32 %v906, %v986
        %v1003 = vmul.f32 %v907, %v987
        %v1004 = vmul.f32 %v908, %v988
        %v1005 = vmul.f32 %v909, %v989
        %v1006 = vmul.f32 %v910, %v990
        %v1007 = vpack.c.bf16 %v992, %v991
        %v1008 = vpack.c.bf16 %v994, %v993
        %v1009 = vpack.c.bf16 %v996, %v995
        %v1010 = vpack.c.bf16 %v998, %v997
        %v1011 = vpack.c.bf16 %v1000, %v999
        %v1012 = vpack.c.bf16 %v1002, %v1001
        %v1013 = vpack.c.bf16 %v1004, %v1003
        %v1014 = vpack.c.bf16 %v1006, %v1005
        %v1023 = vunpack.c.l.b16 %v1007
        %v1024 = vunpack.c.h.b16 %v1007
        %v1025 = vunpack.c.l.b16 %v1008
        %v1026 = vunpack.c.h.b16 %v1008
        %v1027 = vunpack.c.l.b16 %v1009
        %v1028 = vunpack.c.h.b16 %v1009
        %v1029 = vunpack.c.l.b16 %v1010
        %v1030 = vunpack.c.h.b16 %v1010
        %v1031 = vunpack.c.l.b16 %v1011
        %v1032 = vunpack.c.h.b16 %v1011
        %v1033 = vunpack.c.l.b16 %v1012
        %v1034 = vunpack.c.h.b16 %v1012
        %v1035 = vunpack.c.l.b16 %v1013
        %v1036 = vunpack.c.h.b16 %v1013
        %v1037 = vunpack.c.l.b16 %v1014
        %v1038 = vunpack.c.h.b16 %v1014
        %v1039 = vpack.c.b16 %v1023, %v1023
        %v1040 = vpack.c.b16 %v1024, %v1024
        %v1041 = vpack.c.b16 %v1025, %v1025
        %v1042 = vpack.c.b16 %v1026, %v1026
        %v1043 = vpack.c.b16 %v1027, %v1027
        %v1044 = vpack.c.b16 %v1028, %v1028
        %v1045 = vpack.c.b16 %v1029, %v1029
        %v1046 = vpack.c.b16 %v1030, %v1030
        %v1047 = vpack.c.b16 %v1031, %v1031
        %v1048 = vpack.c.b16 %v1032, %v1032
        %v1049 = vpack.c.b16 %v1033, %v1033
        %v1050 = vpack.c.b16 %v1034, %v1034
        %v1051 = vpack.c.b16 %v1035, %v1035
        %v1052 = vpack.c.b16 %v1036, %v1036
        %v1053 = vpack.c.b16 %v1037, %v1037
        %v1054 = vpack.c.b16 %v1038, %v1038
        %1071 = vst [vmem:[%s309] sm:$0xf] %v1039
        %1072 = vst [vmem:[%s309 + $0x4] sm:$0xf] %v1040
        %1073 = vst [vmem:[%s309 + $0x8] sm:$0xf] %v1041
        %1074 = vst [vmem:[%s309 + $0xc] sm:$0xf] %v1042
        %1075 = vst [vmem:[%s309 + $0x10] sm:$0xf] %v1043
        %1076 = vst [vmem:[%s309 + $0x14] sm:$0xf] %v1044
        %1077 = vst [vmem:[%s309 + $0x18] sm:$0xf] %v1045
        %1078 = vst [vmem:[%s309 + $0x1c] sm:$0xf] %v1046
        %1079 = vst [vmem:[%s309 + $0x20] sm:$0xf] %v1047
        %1080 = vst [vmem:[%s309 + $0x24] sm:$0xf] %v1048
        %1081 = vst [vmem:[%s309 + $0x28] sm:$0xf] %v1049
        %1082 = vst [vmem:[%s309 + $0x2c] sm:$0xf] %v1050
        %1083 = vst [vmem:[%s309 + $0x30] sm:$0xf] %v1051
        %1084 = vst [vmem:[%s309 + $0x34] sm:$0xf] %v1052
        %1085 = vst [vmem:[%s309 + $0x38] sm:$0xf] %v1053
        %1086 = vst [vmem:[%s309 + $0x3c] sm:$0xf] %v1054
        %v1087 = vld [vmem:[%s303] sm:$0xff]
        %v1088 = vld [vmem:[%s303 + $0x8] sm:$0xff]
        %v1089 = vld [vmem:[%s303 + $0x10] sm:$0xff]
        %v1090 = vld [vmem:[%s303 + $0x18] sm:$0xff]
        %v1091 = vld [vmem:[%s303 + $0x20] sm:$0xff]
        %v1092 = vld [vmem:[%s303 + $0x28] sm:$0xff]
        %v1093 = vld [vmem:[%s303 + $0x30] sm:$0xff]
        %v1094 = vld [vmem:[%s303 + $0x38] sm:$0xff]
        %v1095 = vld [vmem:[%s303 + $0x40] sm:$0xff]
        %v1096 = vld [vmem:[%s303 + $0x48] sm:$0xff]
        %v1097 = vld [vmem:[%s303 + $0x50] sm:$0xff]
        %v1098 = vld [vmem:[%s303 + $0x58] sm:$0xff]
        %v1099 = vld [vmem:[%s303 + $0x60] sm:$0xff]
        %v1100 = vld [vmem:[%s303 + $0x68] sm:$0xff]
        %v1101 = vld [vmem:[%s303 + $0x70] sm:$0xff]
        %v1102 = vld [vmem:[%s303 + $0x78] sm:$0xff]
        %v1103 = vadd.f32 %v1087, %v991
        %v1104 = vadd.f32 %v1088, %v992
        %v1105 = vadd.f32 %v1089, %v993
        %v1106 = vadd.f32 %v1090, %v994
        %v1107 = vadd.f32 %v1091, %v995
        %v1108 = vadd.f32 %v1092, %v996
        %v1109 = vadd.f32 %v1093, %v997
        %v1110 = vadd.f32 %v1094, %v998
        %v1111 = vadd.f32 %v1095, %v999
        %v1112 = vadd.f32 %v1096, %v1000
        %v1113 = vadd.f32 %v1097, %v1001
        %v1114 = vadd.f32 %v1098, %v1002
        %v1115 = vadd.f32 %v1099, %v1003
        %v1116 = vadd.f32 %v1100, %v1004
        %v1117 = vadd.f32 %v1101, %v1005
        %v1118 = vadd.f32 %v1102, %v1006
        %1119 = vst [vmem:[%s315] sm:$0xff] %v1103
        %1120 = vst [vmem:[%s315 + $0x8] sm:$0xff] %v1104
        %1121 = vst [vmem:[%s315 + $0x10] sm:$0xff] %v1105
        %1122 = vst [vmem:[%s315 + $0x18] sm:$0xff] %v1106
        %1123 = vst [vmem:[%s315 + $0x20] sm:$0xff] %v1107
        %1124 = vst [vmem:[%s315 + $0x28] sm:$0xff] %v1108
        %1125 = vst [vmem:[%s315 + $0x30] sm:$0xff] %v1109
        %1126 = vst [vmem:[%s315 + $0x38] sm:$0xff] %v1110
        %1127 = vst [vmem:[%s315 + $0x40] sm:$0xff] %v1111
        %1128 = vst [vmem:[%s315 + $0x48] sm:$0xff] %v1112
        %1129 = vst [vmem:[%s315 + $0x50] sm:$0xff] %v1113
        %1130 = vst [vmem:[%s315 + $0x58] sm:$0xff] %v1114
        %1131 = vst [vmem:[%s315 + $0x60] sm:$0xff] %v1115
        %1132 = vst [vmem:[%s315 + $0x68] sm:$0xff] %v1116
        %1133 = vst [vmem:[%s315 + $0x70] sm:$0xff] %v1117
        %1134 = vst [vmem:[%s315 + $0x78] sm:$0xff] %v1118
      $region44: #{gcmc_forward.3} parent=35 // pred_fallthru
        _
      %s1135 = smul.u32 16, %s21
      %p1136 = scmp.lt.s32.totalorder %s1135, 31
      %s1137 = scalar_select %p1136, %s1135, 31
      %s1138 = smul.addr %s1137, 4
      %s1139 = scalar_lea.vmem %s4, %s1138
      %s1140 = smul.u32 16, %s21
      %p1141 = scmp.lt.s32.totalorder %s1140, 31
      %s1142 = scalar_select %p1141, %s1140, 31
      %s1143 = smul.addr %s1142, 8
      %s1144 = scalar_lea.vmem %s5, %s1143
      // Predicated region
      $region45: #{gcmc_forward.3} parent=35 // pred_check
        %p1145 = pneg %p148
      $region46: #{gcmc_forward.3} parent=35 // pred_check_branch
        %1147 = sbr.rel (%p1145) target = $region48
      $region47: #{gcmc_forward.3} parent=35 // pred_region
        %s1148 = smul.u32 16, %s21
      $region48: #{gcmc_forward.3} parent=35 // pred_fallthru
        _
      // Predicated region
      $region49: #{gcmc_forward.3} parent=35 // pred_check
        %p1149 = pneg %p174
      $region50: #{gcmc_forward.3} parent=35 // pred_check_branch
        %1151 = sbr.rel (%p1149) target = $region52
      $region51: #{gcmc_forward.3} parent=35 // pred_region
        %s1152 = smul.u32 16, %s21
      $region52: #{gcmc_forward.3} parent=35 // pred_fallthru
        _
    $region36: #{gcmc_forward.3} parent=5 // pred_fallthru
      _
    %p1153 = scmp.le.s32.totalorder 2, %s12
    // Predicated region
    $region53: #{gcmc_forward.3} parent=5 // pred_check
      %p1154 = pneg %p1153
    $region54: #{gcmc_forward.3} parent=5 // pred_check_branch
      %1156 = sbr.rel (%p1154) target = $region56
    $region55: #{gcmc_forward.3} parent=5 // pred_region
      %s1157 = ssub.s32 %s12, 2
      // Predicated region
      $region57: #{gcmc_forward.3} parent=55 // pred_check
        %p1158 = pneg %p154
      $region58: #{gcmc_forward.3} parent=55 // pred_check_branch
        %1160 = sbr.rel (%p1158) target = $region60
      $region59: #{gcmc_forward.3} parent=55 // pred_region
        %s1161 = smul.u32 16, %s23
        %p1162 = scmp.lt.s32.totalorder %s1161, 31
        %s1163 = scalar_select %p1162, %s1161, 31
        %s1164 = smul.addr %s1163, 4
        %s1165 = scalar_lea.vmem %s4, %s1164
      $region60: #{gcmc_forward.3} parent=55 // pred_fallthru
        _
      // Predicated region
      $region61: #{gcmc_forward.3} parent=55 // pred_check
        %p1166 = pneg %p180
      $region62: #{gcmc_forward.3} parent=55 // pred_check_branch
        %1168 = sbr.rel (%p1166) target = $region64
      $region63: #{gcmc_forward.3} parent=55 // pred_region
        %s1169 = smul.u32 16, %s23
        %p1170 = scmp.lt.s32.totalorder %s1169, 31
        %s1171 = scalar_select %p1170, %s1169, 31
        %s1172 = smul.addr %s1171, 8
        %s1173 = scalar_lea.vmem %s5, %s1172
      $region64: #{gcmc_forward.3} parent=55 // pred_fallthru
        _
    $region56: #{gcmc_forward.3} parent=5 // pred_fallthru
      _
  $region6: #{gcmc_forward.3} parent=0 // loop_footer
    %s16 = sadd.s32 1, %s12
  $region7: #{gcmc_forward.3} parent=0 // loop_footer_branch
    %11 = sbr.rel target = $region3
  $region8: #{gcmc_forward.3} parent=0 // loop_exit
    _

</llo_original>
